<compile_context>
chip_gen: v7x
topology: tpu7x:2x2x1
jax: 0.10.0
libtpu: 0.0.40
codegen_flags: <defaults>
</compile_context>

<pallas_src>
import functools

import jax
import jax.numpy as jnp
from jax.experimental import pallas as pl
from jax.experimental.pallas import tpu as pltpu


# ----------------------------- Pallas kernel -------------------------------

def _residual_block_kernel(x_ref, w1_ref, b1_ref, w2_ref, b2_ref, mask_ref,
                           o_ref, y1_ref, stk1_ref, stk2_ref,
                           *, offsets, margin, length, c_in, c_out):
    """Fused conv1+BN+ReLU -> conv2+BN + 1x1 downsample+BN -> residual add.

    x_ref   : (C_in,  M_big)             padded-flat input with halo margin
    w1_ref  : (C_out, k*k*C_in)          BN-scale-folded conv1 weight (stacked)
    w2_ref  : (C_out, k*k*C_out + C_in)  conv2 weight ++ 1x1 downsample weight
    b1_ref  : (C_out, 1)                 BN1 bias
    b2_ref  : (C_out, 1)                 BN2 + BNd combined bias
    mask_ref: (1, L)   1.0 at real output positions, 0.0 on the zero-pad ring
    o_ref   : (C_out, L)                 output in padded-flat coordinates
    y1_ref  : (C_out, M_big)             scratch: stage-1 activation + halo
    stk1_ref: (k*k*C_in, L)              scratch: stacked conv1 operand
    stk2_ref: (k*k*C_out + C_in, L)      scratch: stacked conv2+downsample op
    """
    nt = len(offsets)

    # ---- stack conv1's k*k shifted input slices (one copy pass) -----------
    for t, s in enumerate(offsets):                          # static, unrolled
        lo = margin + s
        stk1_ref[t * c_in:(t + 1) * c_in, :] = x_ref[:, lo:lo + length]

    # ---- conv1 as ONE matmul (BN scale pre-folded) + bias + ReLU ----------
    acc1 = jnp.dot(w1_ref[...], stk1_ref[...],
                   preferred_element_type=jnp.float32)
    # mask zeroes the padding ring -> implements conv2's zero padding exactly
    y1 = jnp.maximum(acc1 + b1_ref[...], 0.0) * mask_ref[...]

    # park y1 in a haloed VMEM buffer for conv2's shifted-window reads.
    # Only the halo strips need initializing (they feed discarded pad-ring
    # lanes only; zeroing keeps them finite/deterministic). Interior store is
    # lane-aligned (margin is a multiple of 128).
    if margin > 0:
        y1_ref[:, :margin] = jnp.zeros((c_out, margin), jnp.float32)
        y1_ref[:, margin + length:] = jnp.zeros((c_out, margin), jnp.float32)
    y1_ref[:, margin:margin + length] = y1

    # ---- stack conv2's shifted y1 slices + the x interior (downsample) ----
    for t, s in enumerate(offsets):
        lo = margin + s
        stk2_ref[t * c_out:(t + 1) * c_out, :] = y1_ref[:, lo:lo + length]
    stk2_ref[nt * c_out:nt * c_out + c_in, :] = x_ref[:, margin:margin + length]

    # ---- conv2 + BN + 1x1 downsample + BN + residual: ONE matmul + bias ---
    acc2 = jnp.dot(w2_ref[...], stk2_ref[...],
                   preferred_element_type=jnp.float32)
    o_ref[...] = (acc2 + b2_ref[...]).astype(o_ref.dtype)


def _full_spec(shape):
    # whole-array block (single grid step; everything resident in VMEM)
    return pl.BlockSpec(shape, lambda i: (0,) * len(shape))


# ------------------------------- JAX glue ----------------------------------

def fold_bn(bn, eps=1e-5):
    gamma, beta, mean, var = bn
    scale = gamma / jnp.sqrt(var + eps)
    bias = beta - mean * scale
    return scale, bias


def residual_block_forward(x, params, *, kernel_size, stride, padding,
                           dilation):
    n, c_in, h, w = x.shape
    c_out = params["w1"].shape[0]
    k, p, d = kernel_size, padding, dilation
    # fused shifted-slice layout assumes stride 1 and "same" spatial size
    assert stride == 1 and 2 * p == d * (k - 1), (
        "fused kernel supports stride=1 with 2*padding == dilation*(k-1)")

    h_p, w_p = h + 2 * p, w + 2 * p
    l_per = h_p * w_p
    length = n * l_per                              # M: lane axis (= 648 here)
    kk = k * k

    # tap shifts in the padded-flat coordinate system
    offsets = tuple((i * d - p) * w_p + (j * d - p)
                    for i in range(k) for j in range(k))
    raw_margin = max(max(offsets), -min(offsets), 0)
    margin = -(-raw_margin // 128) * 128            # 128-aligned halo
    m_big = length + 2 * margin

    # fold BN scales into the conv weights; keep only (C_out, 1) biases
    s1, b1 = fold_bn(params["bn1"])
    s2, b2 = fold_bn(params["bn2"])
    sd, bd = fold_bn(params["bnd"])
    # contraction axis ordered (tap, channel) to match the stacked operands
    w1s = (params["w1"] * s1[:, None, None, None]).transpose(0, 2, 3, 1)
    w1s = w1s.reshape(c_out, kk * c_in)
    w2s = (params["w2"] * s2[:, None, None, None]).transpose(0, 2, 3, 1)
    w2s = w2s.reshape(c_out, kk * c_out)
    wds = params["wd"][:, :, 0, 0] * sd[:, None]
    w2cat = jnp.concatenate([w2s, wds], axis=1)     # (C_out, kk*C_out + C_in)
    b1 = b1[:, None]
    b2d = (b2 + bd)[:, None]

    # channel-major, spatially zero-padded, flattened input with halo margin
    x_big = jnp.pad(
        jnp.pad(x, ((0, 0), (0, 0), (p, p), (p, p)))
        .transpose(1, 0, 2, 3).reshape(c_in, length),
        ((0, 0), (margin, margin)))

    # interior mask: 1.0 at real output positions, 0.0 on the padding ring
    m_img = jnp.zeros((h_p, w_p), jnp.float32).at[p:p + h, p:p + w].set(1.0)
    mask = jnp.tile(m_img.reshape(1, -1), (n, 1)).reshape(1, length)

    kernel = functools.partial(_residual_block_kernel, offsets=offsets,
                               margin=margin, length=length,
                               c_in=c_in, c_out=c_out)

    in_specs = [_full_spec(x_big.shape), _full_spec(w1s.shape),
                _full_spec(b1.shape), _full_spec(w2cat.shape),
                _full_spec(b2d.shape), _full_spec(mask.shape)]

    out_flat = pl.pallas_call(
        kernel,
        out_shape=jax.ShapeDtypeStruct((c_out, length), jnp.float32),
        grid=(1,),
        in_specs=in_specs,
        out_specs=_full_spec((c_out, length)),
        scratch_shapes=[pltpu.VMEM((c_out, m_big), jnp.float32),
                        pltpu.VMEM((kk * c_in, length), jnp.float32),
                        pltpu.VMEM((kk * c_out + c_in, length), jnp.float32)],
        compiler_params=pltpu.CompilerParams(
            dimension_semantics=("arbitrary",),
            allow_input_fusion=[True] * len(in_specs)),
    )(x_big, w1s, b1, w2cat, b2d, mask)

    # padded-flat (C_out, M) -> NCHW interior (ring lanes are discarded here)
    out = out_flat.reshape(c_out, n, h_p, w_p)[:, :, p:p + h, p:p + w]
    return out.transpose(1, 0, 2, 3)


# ------------------------------ reference ----------------------------------

def _ref_conv(x, w, stride, padding, dilation):
    return jax.lax.conv_general_dilated(
        x, w, (stride, stride), [(padding, padding), (padding, padding)],
        rhs_dilation=(dilation, dilation),
        dimension_numbers=("NCHW", "OIHW", "NCHW"))


def _ref_bn(x, bn, eps=1e-5):
    gamma, beta, mean, var = bn
    s = (gamma / jnp.sqrt(var + eps)).reshape(1, -1, 1, 1)
    b = (beta - mean * gamma / jnp.sqrt(var + eps)).reshape(1, -1, 1, 1)
    return x * s + b


def residual_block_ref(x, params, *, kernel_size, stride, padding, dilation):
    y = _ref_conv(x, params["w1"], stride, padding, dilation)
    y = jnp.maximum(_ref_bn(y, params["bn1"]), 0.0)
    y = _ref_conv(y, params["w2"], 1, padding, dilation)
    y = _ref_bn(y, params["bn2"])
    r = _ref_conv(x, params["wd"], stride, 0, 1)
    r = _ref_bn(r, params["bnd"])
    return y + r


# --------------------------------- main -------------------------------------

if __name__ == "__main__":
    # ResidualBlock(in_channels=4, out_channels=8, kernel_size=3,
    #               stride=1, padding=1, dilation=1, downsample=True)
    N, C_IN, C_OUT, H, W, K = 2, 4, 8, 16, 16, 3
    STRIDE, PAD, DIL = 1, 1, 1

    key = jax.random.PRNGKey(0)
    keys = jax.random.split(key, 16)

    def make_bn(k1, k2, k3, k4, c):
        gamma = jax.random.uniform(k1, (c,), jnp.float32, 0.5, 1.5)
        beta = jax.random.normal(k2, (c,), jnp.float32) * 0.1
        mean = jax.random.normal(k3, (c,), jnp.float32) * 0.1
        var = jax.random.uniform(k4, (c,), jnp.float32, 0.5, 1.5)
        return (gamma, beta, mean, var)

    params = {
        "w1": jax.random.normal(keys[0], (C_OUT, C_IN, K, K), jnp.float32) * 0.1,
        "bn1": make_bn(keys[1], keys[2], keys[3], keys[4], C_OUT),
        "w2": jax.random.normal(keys[5], (C_OUT, C_OUT, K, K), jnp.float32) * 0.1,
        "bn2": make_bn(keys[6], keys[7], keys[8], keys[9], C_OUT),
        "wd": jax.random.normal(keys[10], (C_OUT, C_IN, 1, 1), jnp.float32) * 0.1,
        "bnd": make_bn(keys[11], keys[12], keys[13], keys[14], C_OUT),
    }

    x = jax.random.normal(keys[15], (N, C_IN, H, W), jnp.float32)

    fwd = jax.jit(functools.partial(residual_block_forward, kernel_size=K,
                                    stride=STRIDE, padding=PAD, dilation=DIL))
    out = jax.block_until_ready(fwd(x, params))

    ref = residual_block_ref(x, params, kernel_size=K, stride=STRIDE,
                             padding=PAD, dilation=DIL)
    assert out.shape == (N, C_OUT, H, W), out.shape
    assert jnp.allclose(out, ref, rtol=1e-4, atol=1e-4), \
        float(jnp.max(jnp.abs(out - ref)))

    print("KERNEL_OK")
</pallas_src>

<mosaic_0001>
module attributes {stable_mosaic.version = 11 : i64} {
  func.func @_residual_block_kernel(%arg0: i32, %arg1: memref<4x904xf32, #tpu.memory_space<vmem>>, %arg2: memref<8x36xf32, #tpu.memory_space<vmem>>, %arg3: memref<8x1xf32, #tpu.memory_space<vmem>>, %arg4: memref<8x76xf32, #tpu.memory_space<vmem>>, %arg5: memref<8x1xf32, #tpu.memory_space<vmem>>, %arg6: memref<1x648xf32, #tpu.memory_space<vmem>>, %arg7: memref<8x648xf32, #tpu.memory_space<vmem>>, %arg8: memref<8x904xf32, #tpu.memory_space<vmem>>, %arg9: memref<36x648xf32, #tpu.memory_space<vmem>>, %arg10: memref<76x648xf32, #tpu.memory_space<vmem>>) attributes {dimension_semantics = [#tpu.dimension_semantics<arbitrary>], iteration_bounds = array<i64: 1>, scalar_prefetch = 0 : i64, scratch_operands = 3 : i64, tpu.core_type = #tpu.core_type<tc>, window_params = [{pipeline_mode = #tpu.pipeline_mode<synchronous>, transform_indices = @transform_0, window_bounds = array<i64: 4, 904>}, {pipeline_mode = #tpu.pipeline_mode<synchronous>, transform_indices = @transform_1, window_bounds = array<i64: 8, 36>}, {pipeline_mode = #tpu.pipeline_mode<synchronous>, transform_indices = @transform_2, window_bounds = array<i64: 8, 1>}, {pipeline_mode = #tpu.pipeline_mode<synchronous>, transform_indices = @transform_3, window_bounds = array<i64: 8, 76>}, {pipeline_mode = #tpu.pipeline_mode<synchronous>, transform_indices = @transform_4, window_bounds = array<i64: 8, 1>}, {pipeline_mode = #tpu.pipeline_mode<synchronous>, transform_indices = @transform_5, window_bounds = array<i64: 1, 648>}, {pipeline_mode = #tpu.pipeline_mode<synchronous>, transform_indices = @transform_6, window_bounds = array<i64: 8, 648>}]} {
    %c0 = arith.constant 0 : index
    %c109 = arith.constant 109 : index
    %0 = vector.load %arg1[%c0, %c109] : memref<4x904xf32, #tpu.memory_space<vmem>>, vector<4x648xf32>
    %c0_0 = arith.constant 0 : index
    %c0_1 = arith.constant 0 : index
    %1 = vector.load %arg9[%c0_0, %c0_1] : memref<36x648xf32, #tpu.memory_space<vmem>>, vector<4x648xf32>
    tpu.vector_store %arg9[%c0_0, %c0_1], %0 {strides = array<i32>} : memref<36x648xf32, #tpu.memory_space<vmem>>, vector<4x648xf32>,
    %c0_2 = arith.constant 0 : index
    %c110 = arith.constant 110 : index
    %2 = vector.load %arg1[%c0_2, %c110] : memref<4x904xf32, #tpu.memory_space<vmem>>, vector<4x648xf32>
    %c4 = arith.constant 4 : index
    %c0_3 = arith.constant 0 : index
    %3 = vector.load %arg9[%c4, %c0_3] : memref<36x648xf32, #tpu.memory_space<vmem>>, vector<4x648xf32>
    tpu.vector_store %arg9[%c4, %c0_3], %2 {strides = array<i32>} : memref<36x648xf32, #tpu.memory_space<vmem>>, vector<4x648xf32>,
    %c0_4 = arith.constant 0 : index
    %c111 = arith.constant 111 : index
    %4 = vector.load %arg1[%c0_4, %c111] : memref<4x904xf32, #tpu.memory_space<vmem>>, vector<4x648xf32>
    %c8 = arith.constant 8 : index
    %c0_5 = arith.constant 0 : index
    %5 = vector.load %arg9[%c8, %c0_5] : memref<36x648xf32, #tpu.memory_space<vmem>>, vector<4x648xf32>
    tpu.vector_store %arg9[%c8, %c0_5], %4 {strides = array<i32>} : memref<36x648xf32, #tpu.memory_space<vmem>>, vector<4x648xf32>,
    %c0_6 = arith.constant 0 : index
    %c127 = arith.constant 127 : index
    %6 = vector.load %arg1[%c0_6, %c127] : memref<4x904xf32, #tpu.memory_space<vmem>>, vector<4x648xf32>
    %c12 = arith.constant 12 : index
    %c0_7 = arith.constant 0 : index
    %7 = vector.load %arg9[%c12, %c0_7] : memref<36x648xf32, #tpu.memory_space<vmem>>, vector<4x648xf32>
    tpu.vector_store %arg9[%c12, %c0_7], %6 {strides = array<i32>} : memref<36x648xf32, #tpu.memory_space<vmem>>, vector<4x648xf32>,
    %c0_8 = arith.constant 0 : index
    %c128 = arith.constant 128 : index
    %8 = vector.load %arg1[%c0_8, %c128] : memref<4x904xf32, #tpu.memory_space<vmem>>, vector<4x648xf32>
    %c16 = arith.constant 16 : index
    %c0_9 = arith.constant 0 : index
    %9 = vector.load %arg9[%c16, %c0_9] : memref<36x648xf32, #tpu.memory_space<vmem>>, vector<4x648xf32>
    tpu.vector_store %arg9[%c16, %c0_9], %8 {strides = array<i32>} : memref<36x648xf32, #tpu.memory_space<vmem>>, vector<4x648xf32>,
    %c0_10 = arith.constant 0 : index
    %c129 = arith.constant 129 : index
    %10 = vector.load %arg1[%c0_10, %c129] : memref<4x904xf32, #tpu.memory_space<vmem>>, vector<4x648xf32>
    %c20 = arith.constant 20 : index
    %c0_11 = arith.constant 0 : index
    %11 = vector.load %arg9[%c20, %c0_11] : memref<36x648xf32, #tpu.memory_space<vmem>>, vector<4x648xf32>
    tpu.vector_store %arg9[%c20, %c0_11], %10 {strides = array<i32>} : memref<36x648xf32, #tpu.memory_space<vmem>>, vector<4x648xf32>,
    %c0_12 = arith.constant 0 : index
    %c145 = arith.constant 145 : index
    %12 = vector.load %arg1[%c0_12, %c145] : memref<4x904xf32, #tpu.memory_space<vmem>>, vector<4x648xf32>
    %c24 = arith.constant 24 : index
    %c0_13 = arith.constant 0 : index
    %13 = vector.load %arg9[%c24, %c0_13] : memref<36x648xf32, #tpu.memory_space<vmem>>, vector<4x648xf32>
    tpu.vector_store %arg9[%c24, %c0_13], %12 {strides = array<i32>} : memref<36x648xf32, #tpu.memory_space<vmem>>, vector<4x648xf32>,
    %c0_14 = arith.constant 0 : index
    %c146 = arith.constant 146 : index
    %14 = vector.load %arg1[%c0_14, %c146] : memref<4x904xf32, #tpu.memory_space<vmem>>, vector<4x648xf32>
    %c28 = arith.constant 28 : index
    %c0_15 = arith.constant 0 : index
    %15 = vector.load %arg9[%c28, %c0_15] : memref<36x648xf32, #tpu.memory_space<vmem>>, vector<4x648xf32>
    tpu.vector_store %arg9[%c28, %c0_15], %14 {strides = array<i32>} : memref<36x648xf32, #tpu.memory_space<vmem>>, vector<4x648xf32>,
    %c0_16 = arith.constant 0 : index
    %c147 = arith.constant 147 : index
    %16 = vector.load %arg1[%c0_16, %c147] : memref<4x904xf32, #tpu.memory_space<vmem>>, vector<4x648xf32>
    %c32 = arith.constant 32 : index
    %c0_17 = arith.constant 0 : index
    %17 = vector.load %arg9[%c32, %c0_17] : memref<36x648xf32, #tpu.memory_space<vmem>>, vector<4x648xf32>
    tpu.vector_store %arg9[%c32, %c0_17], %16 {strides = array<i32>} : memref<36x648xf32, #tpu.memory_space<vmem>>, vector<4x648xf32>,
    %c0_18 = arith.constant 0 : index
    %c0_19 = arith.constant 0 : index
    %18 = vector.load %arg2[%c0_18, %c0_19] : memref<8x36xf32, #tpu.memory_space<vmem>>, vector<8x36xf32>
    %c0_20 = arith.constant 0 : index
    %c0_21 = arith.constant 0 : index
    %19 = vector.load %arg9[%c0_20, %c0_21] : memref<36x648xf32, #tpu.memory_space<vmem>>, vector<36x648xf32>
    %cst = arith.constant dense<0.000000e+00> : vector<8x648xf32>
    %20 = tpu.matmul %18, %19, %cst {dimension_numbers = #tpu.dot_dimension_numbers<[1], [0], [0], [1], [0, 0, 1, 1], [], []>} : vector<8x36xf32>, vector<36x648xf32>, vector<8x648xf32> -> vector<8x648xf32>
    %c0_22 = arith.constant 0 : index
    %c0_23 = arith.constant 0 : index
    %21 = vector.load %arg3[%c0_22, %c0_23] : memref<8x1xf32, #tpu.memory_space<vmem>>, vector<8x1xf32>
    %22 = vector.broadcast %21 : vector<8x1xf32> to vector<8x648xf32>
    %23 = arith.addf %20, %22 : vector<8x648xf32>
    %cst_24 = arith.constant 0.000000e+00 : f32
    %24 = vector.broadcast %cst_24 : f32 to vector<8x648xf32>
    %25 = arith.maximumf %23, %24 : vector<8x648xf32>
    %c0_25 = arith.constant 0 : index
    %c0_26 = arith.constant 0 : index
    %26 = vector.load %arg6[%c0_25, %c0_26] : memref<1x648xf32, #tpu.memory_space<vmem>>, vector<1x648xf32>
    %27 = vector.broadcast %26 : vector<1x648xf32> to vector<8x648xf32>
    %28 = arith.mulf %25, %27 : vector<8x648xf32>
    %cst_27 = arith.constant 0.000000e+00 : f32
    %29 = vector.broadcast %cst_27 : f32 to vector<8x128xf32>
    %c0_28 = arith.constant 0 : index
    %c0_29 = arith.constant 0 : index
    %30 = vector.load %arg8[%c0_28, %c0_29] : memref<8x904xf32, #tpu.memory_space<vmem>>, vector<8x128xf32>
    tpu.vector_store %arg8[%c0_28, %c0_29], %29 {strides = array<i32>} : memref<8x904xf32, #tpu.memory_space<vmem>>, vector<8x128xf32>,
    %cst_30 = arith.constant 0.000000e+00 : f32
    %31 = vector.broadcast %cst_30 : f32 to vector<8x128xf32>
    %c0_31 = arith.constant 0 : index
    %c776 = arith.constant 776 : index
    %32 = vector.load %arg8[%c0_31, %c776] : memref<8x904xf32, #tpu.memory_space<vmem>>, vector<8x128xf32>
    tpu.vector_store %arg8[%c0_31, %c776], %31 {strides = array<i32>} : memref<8x904xf32, #tpu.memory_space<vmem>>, vector<8x128xf32>,
    %c0_32 = arith.constant 0 : index
    %c128_33 = arith.constant 128 : index
    %33 = vector.load %arg8[%c0_32, %c128_33] : memref<8x904xf32, #tpu.memory_space<vmem>>, vector<8x648xf32>
    tpu.vector_store %arg8[%c0_32, %c128_33], %28 {strides = array<i32>} : memref<8x904xf32, #tpu.memory_space<vmem>>, vector<8x648xf32>,
    %c0_34 = arith.constant 0 : index
    %c109_35 = arith.constant 109 : index
    %34 = vector.load %arg8[%c0_34, %c109_35] : memref<8x904xf32, #tpu.memory_space<vmem>>, vector<8x648xf32>
    %c0_36 = arith.constant 0 : index
    %c0_37 = arith.constant 0 : index
    %35 = vector.load %arg10[%c0_36, %c0_37] : memref<76x648xf32, #tpu.memory_space<vmem>>, vector<8x648xf32>
    tpu.vector_store %arg10[%c0_36, %c0_37], %34 {strides = array<i32>} : memref<76x648xf32, #tpu.memory_space<vmem>>, vector<8x648xf32>,
    %c0_38 = arith.constant 0 : index
    %c110_39 = arith.constant 110 : index
    %36 = vector.load %arg8[%c0_38, %c110_39] : memref<8x904xf32, #tpu.memory_space<vmem>>, vector<8x648xf32>
    %c8_40 = arith.constant 8 : index
    %c0_41 = arith.constant 0 : index
    %37 = vector.load %arg10[%c8_40, %c0_41] : memref<76x648xf32, #tpu.memory_space<vmem>>, vector<8x648xf32>
    tpu.vector_store %arg10[%c8_40, %c0_41], %36 {strides = array<i32>} : memref<76x648xf32, #tpu.memory_space<vmem>>, vector<8x648xf32>,
    %c0_42 = arith.constant 0 : index
    %c111_43 = arith.constant 111 : index
    %38 = vector.load %arg8[%c0_42, %c111_43] : memref<8x904xf32, #tpu.memory_space<vmem>>, vector<8x648xf32>
    %c16_44 = arith.constant 16 : index
    %c0_45 = arith.constant 0 : index
    %39 = vector.load %arg10[%c16_44, %c0_45] : memref<76x648xf32, #tpu.memory_space<vmem>>, vector<8x648xf32>
    tpu.vector_store %arg10[%c16_44, %c0_45], %38 {strides = array<i32>} : memref<76x648xf32, #tpu.memory_space<vmem>>, vector<8x648xf32>,
    %c0_46 = arith.constant 0 : index
    %c127_47 = arith.constant 127 : index
    %40 = vector.load %arg8[%c0_46, %c127_47] : memref<8x904xf32, #tpu.memory_space<vmem>>, vector<8x648xf32>
    %c24_48 = arith.constant 24 : index
    %c0_49 = arith.constant 0 : index
    %41 = vector.load %arg10[%c24_48, %c0_49] : memref<76x648xf32, #tpu.memory_space<vmem>>, vector<8x648xf32>
    tpu.vector_store %arg10[%c24_48, %c0_49], %40 {strides = array<i32>} : memref<76x648xf32, #tpu.memory_space<vmem>>, vector<8x648xf32>,
    %c0_50 = arith.constant 0 : index
    %c128_51 = arith.constant 128 : index
    %42 = vector.load %arg8[%c0_50, %c128_51] : memref<8x904xf32, #tpu.memory_space<vmem>>, vector<8x648xf32>
    %c32_52 = arith.constant 32 : index
    %c0_53 = arith.constant 0 : index
    %43 = vector.load %arg10[%c32_52, %c0_53] : memref<76x648xf32, #tpu.memory_space<vmem>>, vector<8x648xf32>
    tpu.vector_store %arg10[%c32_52, %c0_53], %42 {strides = array<i32>} : memref<76x648xf32, #tpu.memory_space<vmem>>, vector<8x648xf32>,
    %c0_54 = arith.constant 0 : index
    %c129_55 = arith.constant 129 : index
    %44 = vector.load %arg8[%c0_54, %c129_55] : memref<8x904xf32, #tpu.memory_space<vmem>>, vector<8x648xf32>
    %c40 = arith.constant 40 : index
    %c0_56 = arith.constant 0 : index
    %45 = vector.load %arg10[%c40, %c0_56] : memref<76x648xf32, #tpu.memory_space<vmem>>, vector<8x648xf32>
    tpu.vector_store %arg10[%c40, %c0_56], %44 {strides = array<i32>} : memref<76x648xf32, #tpu.memory_space<vmem>>, vector<8x648xf32>,
    %c0_57 = arith.constant 0 : index
    %c145_58 = arith.constant 145 : index
    %46 = vector.load %arg8[%c0_57, %c145_58] : memref<8x904xf32, #tpu.memory_space<vmem>>, vector<8x648xf32>
    %c48 = arith.constant 48 : index
    %c0_59 = arith.constant 0 : index
    %47 = vector.load %arg10[%c48, %c0_59] : memref<76x648xf32, #tpu.memory_space<vmem>>, vector<8x648xf32>
    tpu.vector_store %arg10[%c48, %c0_59], %46 {strides = array<i32>} : memref<76x648xf32, #tpu.memory_space<vmem>>, vector<8x648xf32>,
    %c0_60 = arith.constant 0 : index
    %c146_61 = arith.constant 146 : index
    %48 = vector.load %arg8[%c0_60, %c146_61] : memref<8x904xf32, #tpu.memory_space<vmem>>, vector<8x648xf32>
    %c56 = arith.constant 56 : index
    %c0_62 = arith.constant 0 : index
    %49 = vector.load %arg10[%c56, %c0_62] : memref<76x648xf32, #tpu.memory_space<vmem>>, vector<8x648xf32>
    tpu.vector_store %arg10[%c56, %c0_62], %48 {strides = array<i32>} : memref<76x648xf32, #tpu.memory_space<vmem>>, vector<8x648xf32>,
    %c0_63 = arith.constant 0 : index
    %c147_64 = arith.constant 147 : index
    %50 = vector.load %arg8[%c0_63, %c147_64] : memref<8x904xf32, #tpu.memory_space<vmem>>, vector<8x648xf32>
    %c64 = arith.constant 64 : index
    %c0_65 = arith.constant 0 : index
    %51 = vector.load %arg10[%c64, %c0_65] : memref<76x648xf32, #tpu.memory_space<vmem>>, vector<8x648xf32>
    tpu.vector_store %arg10[%c64, %c0_65], %50 {strides = array<i32>} : memref<76x648xf32, #tpu.memory_space<vmem>>, vector<8x648xf32>,
    %c0_66 = arith.constant 0 : index
    %c128_67 = arith.constant 128 : index
    %52 = vector.load %arg1[%c0_66, %c128_67] : memref<4x904xf32, #tpu.memory_space<vmem>>, vector<4x648xf32>
    %c72 = arith.constant 72 : index
    %c0_68 = arith.constant 0 : index
    %53 = vector.load %arg10[%c72, %c0_68] : memref<76x648xf32, #tpu.memory_space<vmem>>, vector<4x648xf32>
    tpu.vector_store %arg10[%c72, %c0_68], %52 {strides = array<i32>} : memref<76x648xf32, #tpu.memory_space<vmem>>, vector<4x648xf32>,
    %c0_69 = arith.constant 0 : index
    %c0_70 = arith.constant 0 : index
    %54 = vector.load %arg4[%c0_69, %c0_70] : memref<8x76xf32, #tpu.memory_space<vmem>>, vector<8x76xf32>
    %c0_71 = arith.constant 0 : index
    %c0_72 = arith.constant 0 : index
    %55 = vector.load %arg10[%c0_71, %c0_72] : memref<76x648xf32, #tpu.memory_space<vmem>>, vector<76x648xf32>
    %cst_73 = arith.constant dense<0.000000e+00> : vector<8x648xf32>
    %56 = tpu.matmul %54, %55, %cst_73 {dimension_numbers = #tpu.dot_dimension_numbers<[1], [0], [0], [1], [0, 0, 1, 1], [], []>} : vector<8x76xf32>, vector<76x648xf32>, vector<8x648xf32> -> vector<8x648xf32>
    %c0_74 = arith.constant 0 : index
    %c0_75 = arith.constant 0 : index
    %57 = vector.load %arg5[%c0_74, %c0_75] : memref<8x1xf32, #tpu.memory_space<vmem>>, vector<8x1xf32>
    %58 = vector.broadcast %57 : vector<8x1xf32> to vector<8x648xf32>
    %59 = arith.addf %56, %58 : vector<8x648xf32>
    %c0_76 = arith.constant 0 : index
    %c0_77 = arith.constant 0 : index
    %60 = vector.load %arg7[%c0_76, %c0_77] : memref<8x648xf32, #tpu.memory_space<vmem>>, vector<8x648xf32>
    tpu.vector_store %arg7[%c0_76, %c0_77], %59 {strides = array<i32>} : memref<8x648xf32, #tpu.memory_space<vmem>>, vector<8x648xf32>,
    return
  }
  func.func @transform_0(%arg0: i32) -> (i32, i32) {
    %c0_i32 = arith.constant 0 : i32
    %c0_i32_0 = arith.constant 0 : i32
    %c0_i32_1 = arith.constant 0 : i32
    return %c0_i32, %c0_i32_0 : i32, i32
  }
  func.func @transform_1(%arg0: i32) -> (i32, i32) {
    %c0_i32 = arith.constant 0 : i32
    %c0_i32_0 = arith.constant 0 : i32
    %c0_i32_1 = arith.constant 0 : i32
    return %c0_i32, %c0_i32_0 : i32, i32
  }
  func.func @transform_2(%arg0: i32) -> (i32, i32) {
    %c0_i32 = arith.constant 0 : i32
    %c0_i32_0 = arith.constant 0 : i32
    %c0_i32_1 = arith.constant 0 : i32
    return %c0_i32, %c0_i32_0 : i32, i32
  }
  func.func @transform_3(%arg0: i32) -> (i32, i32) {
    %c0_i32 = arith.constant 0 : i32
    %c0_i32_0 = arith.constant 0 : i32
    %c0_i32_1 = arith.constant 0 : i32
    return %c0_i32, %c0_i32_0 : i32, i32
  }
  func.func @transform_4(%arg0: i32) -> (i32, i32) {
    %c0_i32 = arith.constant 0 : i32
    %c0_i32_0 = arith.constant 0 : i32
    %c0_i32_1 = arith.constant 0 : i32
    return %c0_i32, %c0_i32_0 : i32, i32
  }
  func.func @transform_5(%arg0: i32) -> (i32, i32) {
    %c0_i32 = arith.constant 0 : i32
    %c0_i32_0 = arith.constant 0 : i32
    %c0_i32_1 = arith.constant 0 : i32
    return %c0_i32, %c0_i32_0 : i32, i32
  }
  func.func @transform_6(%arg0: i32) -> (i32, i32) {
    %c0_i32 = arith.constant 0 : i32
    %c0_i32_0 = arith.constant 0 : i32
    %c0_i32_1 = arith.constant 0 : i32
    return %c0_i32, %c0_i32_0 : i32, i32
  }
}

</mosaic_0001>

<llo_original>
// kernel: tile.6
$region0: #{tile.6}
  #allocation0 [shape = 's32[1]{0}', space=sflag, size = 0x4, scoped, tag = 'scoped memory for tile.6']
  %s0 = inlined_call_operand.vmem [shape: f32[324], index: 0, kind: input, shape index: {}]
  %s1 = inlined_call_operand.vmem [shape: f32[2,1,1,324], index: 1, kind: output, shape index: {}]
  // Predicated region
  $region2: #{tile.6} parent=0 // pred_check
    _
  $region3: #{tile.6} parent=0 // pred_check_branch
    %3 = sbr.rel (0) target = $region5
  $region4: #{tile.6} parent=0 // pred_region
    _
  $region5: #{tile.6} parent=0 // pred_fallthru
    _
  %v4 = vld [vmem:[%s0] ss:$0 sm:$0xff]
  %5 = vst [vmem:[%s1] sm:$0x3] %v4
  %s6 = scalar_lea.vmem %s0, 1
  %v7 = vld [vmem:[%s6] ss:$0 sm:$0xff]
  %s8 = scalar_lea.vmem %s1, 2
  %9 = vst [vmem:[%s8] sm:$0x3] %v7
  %s10 = scalar_lea.vmem %s0, 2
  %v11 = vld [vmem:[%s10] ss:$0 sm:$0xff]
  %s12 = scalar_lea.vmem %s1, 4
  %13 = vst [vmem:[%s12] sm:$0x3] %v11

// kernel: tile.7
$region0: #{tile.7}
  %s0 = inlined_call_operand.vmem [shape: f32[2,1,1,324], index: 0, kind: input, shape index: {}]
  %s1 = inlined_call_operand.vmem [shape: f32[1,648], index: 1, kind: output, shape index: {}]
  $region1: #{tile.7} parent=0
    #allocation0 [shape = 'u8[24576]{0}', space=vmem, size = 0x6000, scoped, tag = 'scoped mem for output reshape']
    #allocation1 [shape = 'u8[12288]{0}', space=vmem, size = 0x3000, scoped, tag = 'scoped mem for input reshape']
    %s3 = sshllo.u32 0, 2
    %s4 = smul.addr 2, 2
    %s5 = scalar_lea.vmem %s0, %s4
    %v6 = vld [vmem:[%s5] sm:%s3]
    %s7 = scalar_lea.vmem [#allocation1], 16
    %8 = vst [vmem:[%s7] sm:%s3] %v6
    %s9 = scalar_lea.vmem %s0, 2
    %v10 = vld [vmem:[%s9] sm:%s3]
    %s11 = scalar_lea.vmem [#allocation1], 8
    %12 = vst [vmem:[%s11] sm:%s3] %v10
    %v13 = vld [vmem:[%s0] sm:%s3]
    %14 = vst [vmem:[#allocation1] sm:%s3] %v13
    %s15 = scalar_lea.vmem [#allocation1], 16
    %v16 = vld [vmem:[%s15] sm:$0x1]
    %vm17 = vcmask 556032
    %s18 = scalar_lea.vmem [#allocation0], 16
    %19 = vst.msk [vmem:[%s18] sm:$0x1] %vm17, %v16
    %s20 = smov 3
    %v21 = vld [vmem:[#allocation1] ss:$8 sm:%s20]
    %22 = vst [vmem:[#allocation0] ss:$8 sm:$0x3] %v21
    %s23 = scalar_lea.vmem [#allocation1], 17
    %v24 = vld [vmem:[%s23] sm:$0x1]
    %s25 = scalar_lea.vmem [#allocation1], 17
    %s26 = smov 3
    %v27 = vld [vmem:[%s25] ss:$-16 sm:%s26]
    %s28 = scalar_lea.vmem [#allocation1], 7
    %v29 = vld [vmem:[%s28] sm:$0x4]
    %vm30 = vcmask 1042434
    %v31 = vsel %vm30, %v29, %v27
    %vm32 = vcmask 490496
    %v33 = vsel %vm32, %v31, %v24
    %34 = vrot.lane.b32.xlu0 %v33, 68
    %v35 = vpop.permute.xlu0 %34
    %vm36 = vcmask 64512
    %s37 = scalar_lea.vmem [#allocation0], 40
    %38 = vst.msk [vmem:[%s37] sm:$0x1] %vm36, %v35
    %vm39 = vcmask 1048096
    %s40 = scalar_lea.vmem [#allocation0], 32
    %41 = vst.msk [vmem:[%s40] ss:$-16 sm:$0x3] %vm39, %v35
    %s42 = scalar_lea.vmem [#allocation0], 22
    %43 = vst.msk [vmem:[%s42] sm:$0x4] %vm39, %v35
    %s44 = scalar_lea.vmem [#allocation1], 9
    %s45 = smov 3
    %v46 = vld [vmem:[%s44] ss:$-8 sm:%s45]
    %47 = vrot.lane.b32.xlu0 %v46, 68
    %v48 = vpop.permute.xlu0 %47
    %vm49 = vcmask 556032
    %s50 = scalar_lea.vmem [#allocation0], 32
    %51 = vst.msk [vmem:[%s50] ss:$-8 sm:$0x3] %vm49, %v48
    %s53 = sshllo.u32 0, 1
    %v55 = vld [vmem:[#allocation0] sm:%s53]
    %s56 = sshllo.u32 0, 1
    %57 = vst [vmem:[%s1] sm:%s56] %v55
    %s58 = scalar_lea.vmem [#allocation0], 8
    %v59 = vld [vmem:[%s58] sm:%s53]
    %s60 = sshllo.u32 0, 1
    %s61 = scalar_lea.vmem %s1, 1
    %62 = vst [vmem:[%s61] sm:%s60] %v59
    %s63 = scalar_lea.vmem [#allocation0], 16
    %v64 = vld [vmem:[%s63] sm:%s53]
    %s65 = sshllo.u32 0, 1
    %s66 = smul.addr 1, 2
    %s67 = scalar_lea.vmem %s1, %s66
    %68 = vst [vmem:[%s67] sm:%s65] %v64
    %s69 = scalar_lea.vmem [#allocation0], 24
    %v70 = vld [vmem:[%s69] sm:%s53]
    %s71 = sshllo.u32 0, 1
    %s72 = smul.addr 1, 3
    %s73 = scalar_lea.vmem %s1, %s72
    %74 = vst [vmem:[%s73] sm:%s71] %v70
    %s75 = scalar_lea.vmem [#allocation0], 32
    %v76 = vld [vmem:[%s75] sm:%s53]
    %s77 = sshllo.u32 0, 1
    %s78 = smul.addr 1, 4
    %s79 = scalar_lea.vmem %s1, %s78
    %80 = vst [vmem:[%s79] sm:%s77] %v76
    %s81 = scalar_lea.vmem [#allocation0], 40
    %v82 = vld [vmem:[%s81] sm:%s53]
    %s83 = sshllo.u32 0, 1
    %s84 = smul.addr 1, 5
    %s85 = scalar_lea.vmem %s1, %s84
    %86 = vst [vmem:[%s85] sm:%s83] %v82

// kernel: residual_block_forward.2
$region0: #{residual_block_forward.2}
  #allocation0 [shape = 'u32[]', space=smem, size = 0x4, offset = 0x4, fixed_abs, tag = 'smem constant byte address 0x4 - core index']
  #allocation1 [shape = 'u32[144,128]{1,0:T(1,128)}', space=vmem, size = 0x12000, scoped, tag = 'internal scratch']
  #allocation2 [shape = 'f32[8,904]{1,0:T(8,128)}', space=vmem, size = 0x8000, scoped, tag = 'scratch operand']
  #allocation3 [shape = 'f32[36,648]{1,0:T(8,128)}', space=vmem, size = 0x1e000, scoped, tag = 'scratch operand']
  #allocation4 [shape = 'f32[76,648]{1,0:T(8,128)}', space=vmem, size = 0x3c000, scoped, tag = 'scratch operand']
  #allocation5 [shape = 'u32[2048]{0}', space=vmem, size = 0x2000, scoped, tag = 'scoped memory for residual_block_forward.2']
  #allocation6 [shape = 'u32[2048]{0}', space=vmem, size = 0x2000, scoped, tag = 'scoped memory for residual_block_forward.2']
  #allocation7 [shape = 'u32[2048]{0}', space=vmem, size = 0x2000, scoped, tag = 'scoped memory for residual_block_forward.2']
  #allocation8 [shape = 'u32[2048]{0}', space=vmem, size = 0x2000, scoped, tag = 'scoped memory for residual_block_forward.2']
  #allocation9 [shape = 'u32[2048]{0}', space=vmem, size = 0x2000, scoped, tag = 'scoped memory for residual_block_forward.2']
  #allocation10 [shape = 'u32[2048]{0}', space=vmem, size = 0x2000, scoped, tag = 'scoped memory for residual_block_forward.2']
  #allocation11 [shape = 'u32[2048]{0}', space=vmem, size = 0x2000, scoped, tag = 'scoped memory for residual_block_forward.2']
  #allocation12 [shape = 'u32[2048]{0}', space=vmem, size = 0x2000, scoped, tag = 'scoped memory for residual_block_forward.2']
  #allocation13 [shape = 'u32[2048]{0}', space=vmem, size = 0x2000, scoped, tag = 'scoped memory for residual_block_forward.2']
  #allocation14 [shape = 'u32[2048]{0}', space=vmem, size = 0x2000, scoped, tag = 'scoped memory for residual_block_forward.2']
  #allocation15 [shape = 'u32[2048]{0}', space=vmem, size = 0x2000, scoped, tag = 'scoped memory for residual_block_forward.2']
  #allocation16 [shape = 'u32[2048]{0}', space=vmem, size = 0x2000, scoped, tag = 'scoped memory for residual_block_forward.2']
  #allocation17 [shape = 'u32[2048]{0}', space=vmem, size = 0x2000, scoped, tag = 'scoped memory for residual_block_forward.2']
  #allocation18 [shape = 'u32[2048]{0}', space=vmem, size = 0x2000, scoped, tag = 'scoped memory for residual_block_forward.2']
  #allocation19 [shape = 'u32[2048]{0}', space=vmem, size = 0x2000, scoped, tag = 'scoped memory for residual_block_forward.2']
  %s0 = inlined_call_operand.vmem [shape: f32[8,36], index: 0, kind: input, shape index: {}]
  %s1 = inlined_call_operand.vmem [shape: f32[8,1], index: 1, kind: input, shape index: {}]
  %s2 = inlined_call_operand.vmem [shape: f32[8,1], index: 2, kind: input, shape index: {}]
  %s3 = inlined_call_operand.vmem [shape: f32[1,648], index: 3, kind: input, shape index: {}]
  %s4 = inlined_call_operand.vmem [shape: f32[4,648], index: 4, kind: input, shape index: {}]
  %s5 = inlined_call_operand.<no memory space> [shape: f32[], index: 5, kind: input, shape index: {}]
  %s6 = inlined_call_operand.vmem [shape: f32[8,4], index: 6, kind: input, shape index: {}]
  %s7 = inlined_call_operand.<no memory space> [shape: f32[], index: 7, kind: input, shape index: {}]
  %s8 = inlined_call_operand.vmem [shape: f32[8,72], index: 8, kind: input, shape index: {}]
  %s9 = inlined_call_operand.vmem [shape: f32[8,648], index: 9, kind: output, shape index: {}]
  %s10 = sld [smem:[#allocation0]]
  $region38: #{residual_block_forward.2} parent=0
    _
  %s12 = ssub.s32 1, %s10
  %s13 = scalar_select 0, %s12, %s10
  %v14 = vstv %s5
  %v15 = vstv %s7
  %v16 = vstv %s7
  $region1: #{residual_block_forward.2} parent=0
    #allocation20 [shape = 'u8[16384]{0}', space=vmem, size = 0x4000, dematerialized = true, scoped, tag = 'FusionAdapter Buffer %fusion.1 = f32[4,904]{1,0:T(4,128)} fusion(%param_4.2, %param_5.2), kind=kLoop, calls=%fused_computation.5.clone, metadata={op_name="jit(residual_block_forward)/jit(_pad)/pad" stack_frame_id=43}']
    #allocation21 [shape = 'u8[4096]{0}', space=vmem, size = 0x1000, dematerialized = true, scoped, tag = 'FusionAdapter Buffer %fusion.2 = f32[8,76]{1,0:T(8,128)} fusion(%param_6.2, %param_7.2, %param_8.1), kind=kLoop, calls=%fused_computation.6.clone, metadata={op_name="jit(residual_block_forward)/concatenate" stack_frame_id=36}']
    // Predicated region
    $region2: #{residual_block_forward.2} parent=1 // pred_check
      _
    $region3: #{residual_block_forward.2} parent=1 // pred_check_branch
      %18 = sbr.rel (0) target = $region5
    $region4: #{residual_block_forward.2} parent=1 // pred_region
      %s19 = scalar_lea.vmem %s4, 4294967292
    $region5: #{residual_block_forward.2} parent=1 // pred_fallthru
      _
    // Predicated region
    $region6: #{residual_block_forward.2} parent=1 // pred_check
      _
    $region7: #{residual_block_forward.2} parent=1 // pred_check_branch
      %21 = sbr.rel (0) target = $region9
    $region8: #{residual_block_forward.2} parent=1 // pred_region
      _
    $region9: #{residual_block_forward.2} parent=1 // pred_fallthru
      _
    // Predicated region
    $region10: #{residual_block_forward.2} parent=1 // pred_check
      _
    $region11: #{residual_block_forward.2} parent=1 // pred_check_branch
      %23 = sbr.rel (0) target = $region13
    $region12: #{residual_block_forward.2} parent=1 // pred_region
      _
    $region13: #{residual_block_forward.2} parent=1 // pred_fallthru
      _
    // Predicated region
    $region14: #{residual_block_forward.2} parent=1 // pred_check
      _
    $region15: #{residual_block_forward.2} parent=1 // pred_check_branch
      %25 = sbr.rel (0) target = $region17
    $region16: #{residual_block_forward.2} parent=1 // pred_region
      %s27 = ssub.s32 1, 0
      %s28 = smul.u32 128, %s27
      %p29 = scmp.lt.s32.totalorder 0, 0
      %s30 = scalar_select %p29, 0, 0
      %s31 = smul.addr %s30, 8
      %s32 = scalar_lea.vmem %s6, %s31
      %s34 = ssub.s32 1, 0
      %s35 = smul.u32 128, %s34
    $region17: #{residual_block_forward.2} parent=1 // pred_fallthru
      _
    // Predicated region
    $region18: #{residual_block_forward.2} parent=1 // pred_check
      _
    $region19: #{residual_block_forward.2} parent=1 // pred_check_branch
      %37 = sbr.rel (0) target = $region21
    $region20: #{residual_block_forward.2} parent=1 // pred_region
      _
    $region21: #{residual_block_forward.2} parent=1 // pred_fallthru
      _
    // Predicated region
    $region22: #{residual_block_forward.2} parent=1 // pred_check
      _
    $region23: #{residual_block_forward.2} parent=1 // pred_check_branch
      %39 = sbr.rel (0) target = $region25
    $region24: #{residual_block_forward.2} parent=1 // pred_region
      _
    $region25: #{residual_block_forward.2} parent=1 // pred_fallthru
      _
    // Predicated region
    $region26: #{residual_block_forward.2} parent=1 // pred_check
      _
    $region27: #{residual_block_forward.2} parent=1 // pred_check_branch
      %41 = sbr.rel (0) target = $region29
    $region28: #{residual_block_forward.2} parent=1 // pred_region
      _
    $region29: #{residual_block_forward.2} parent=1 // pred_fallthru
      _
    %s42 = scalar_lea.vmem %s4, 4294967292
    %s44 = ssub.s32 1, 0
    %s45 = smul.u32 128, %s44
    %p46 = scmp.lt.s32.totalorder 0, 0
    %s47 = scalar_select %p46, 0, 0
    %s48 = smul.addr %s47, 8
    %s49 = scalar_lea.vmem %s6, %s48
    %s50 = scalar_lea.vmem %s4, 4294967292
    %s52 = ssub.s32 1, 0
    %s53 = smul.u32 128, %s52
    %p54 = scmp.lt.s32.totalorder 0, 0
    %s55 = scalar_select %p54, 0, 0
    %s56 = smul.addr %s55, 8
    %s57 = scalar_lea.vmem %s6, %s56
    %s59 = ssub.s32 1, 0
    %s60 = smul.u32 128, %s59
    %62 = vst [vmem:[#allocation20] sm:$0xf] %v14
    %s63 = scalar_lea.vmem %s50, 4
    %v64 = vld [vmem:[%s63] sm:$0xf]
    %v65 = vlaneseq
    %v66 = vshrl.u32 %v65, 7
    %vm68 = vcmp.lt.s32.totalorder %v66, 4
    %v69 = vsel %vm68, %v64, %v14
    %v70 = vlaneseq
    %v71 = vand.u32 %v70, 127
    %v72 = vadd.s32 %v71, 128
    %vm73 = vcmp.lt.s32.totalorder %v72, 776
    %v74 = vsel %vm73, %v69, %v14
    %s75 = scalar_lea.vmem [#allocation20], 4
    %77 = vst [vmem:[%s75] sm:$0xf] %v74
    %s78 = scalar_lea.vmem %s50, 8
    %v79 = vld [vmem:[%s78] sm:$0xf]
    %v80 = vlaneseq
    %v81 = vshrl.u32 %v80, 7
    %vm83 = vcmp.lt.s32.totalorder %v81, 4
    %v84 = vsel %vm83, %v79, %v14
    %v85 = vlaneseq
    %v86 = vand.u32 %v85, 127
    %v87 = vadd.s32 %v86, 256
    %vm88 = vcmp.lt.s32.totalorder %v87, 776
    %v89 = vsel %vm88, %v84, %v14
    %s90 = scalar_lea.vmem [#allocation20], 8
    %92 = vst [vmem:[%s90] sm:$0xf] %v89
    %s93 = scalar_lea.vmem %s50, 12
    %v94 = vld [vmem:[%s93] sm:$0xf]
    %v95 = vlaneseq
    %v96 = vshrl.u32 %v95, 7
    %vm98 = vcmp.lt.s32.totalorder %v96, 4
    %v99 = vsel %vm98, %v94, %v14
    %v100 = vlaneseq
    %v101 = vand.u32 %v100, 127
    %v102 = vadd.s32 %v101, 384
    %vm103 = vcmp.lt.s32.totalorder %v102, 776
    %v104 = vsel %vm103, %v99, %v14
    %s105 = scalar_lea.vmem [#allocation20], 12
    %107 = vst [vmem:[%s105] sm:$0xf] %v104
    %s108 = scalar_lea.vmem %s50, 16
    %v109 = vld [vmem:[%s108] sm:$0xf]
    %v110 = vlaneseq
    %v111 = vshrl.u32 %v110, 7
    %vm113 = vcmp.lt.s32.totalorder %v111, 4
    %v114 = vsel %vm113, %v109, %v14
    %v115 = vlaneseq
    %v116 = vand.u32 %v115, 127
    %v117 = vadd.s32 %v116, 512
    %vm118 = vcmp.lt.s32.totalorder %v117, 776
    %v119 = vsel %vm118, %v114, %v14
    %s120 = scalar_lea.vmem [#allocation20], 16
    %122 = vst [vmem:[%s120] sm:$0xf] %v119
    %s123 = scalar_lea.vmem %s50, 20
    %v124 = vld [vmem:[%s123] sm:$0xf]
    %v125 = vlaneseq
    %v126 = vshrl.u32 %v125, 7
    %vm128 = vcmp.lt.s32.totalorder %v126, 4
    %v129 = vsel %vm128, %v124, %v14
    %v130 = vlaneseq
    %v131 = vand.u32 %v130, 127
    %v132 = vadd.s32 %v131, 640
    %vm133 = vcmp.lt.s32.totalorder %v132, 776
    %v134 = vsel %vm133, %v129, %v14
    %s135 = scalar_lea.vmem [#allocation20], 20
    %137 = vst [vmem:[%s135] sm:$0xf] %v134
    %s138 = scalar_lea.vmem %s50, 24
    %v139 = vld [vmem:[%s138] sm:$0xf]
    %v140 = vlaneseq
    %v141 = vshrl.u32 %v140, 7
    %vm143 = vcmp.lt.s32.totalorder %v141, 4
    %v144 = vsel %vm143, %v139, %v14
    %v145 = vlaneseq
    %v146 = vand.u32 %v145, 127
    %v147 = vadd.s32 %v146, 768
    %vm148 = vcmp.lt.s32.totalorder %v147, 776
    %v149 = vsel %vm148, %v144, %v14
    %s150 = scalar_lea.vmem [#allocation20], 24
    %152 = vst [vmem:[%s150] sm:$0xf] %v149
    %s153 = scalar_lea.vmem [#allocation20], 28
    %155 = vst [vmem:[%s153] sm:$0xf] %v14
    %s156 = ssub.s32 0, 0
    %p157 = scmp.lt.s32.totalorder %s156, 0
    %s158 = scalar_select %p157, 0, 255
    %v159 = vld [vmem:[%s57] sm:%s158]
    %v160 = vlaneseq
    %v161 = vand.u32 %v160, 127
    %v162 = vadd.s32 %v161, 128
    %vm163 = vcmp.lt.s32.totalorder %v162, 132
    %v164 = vsel %vm163, %v159, %v15
    %v165 = vlaneseq
    %v166 = vand.u32 %v165, 127
    %vm167 = vcmp.lt.s32.totalorder %v166, 56
    %v168 = vsel %vm167, %v164, %v15
    %169 = vrot.lane.b32.xlu0 %v168, 72
    %v170 = vpop.permute.xlu0 %169
    %v171 = vld [vmem:[%s8] sm:$0xff]
    %v172 = vlaneseq
    %v173 = vand.u32 %v172, 127
    %vm175 = vcmp.lt.s32.totalorder %v173, 72
    %v176 = vsel %vm175, %v171, %v16
    %177 = xla_tuple %v176, %v170
    %178 = xla_tuple %177
    %v179 = vmax.f32 %v176, %v170
    %180 = xla_tuple %v179
    %182 = vst [vmem:[#allocation21] sm:$0xff] %v179
    %v183 = vld [vmem:[#allocation20] sm:$0xff]
    %v184 = vld [vmem:[#allocation20 + $0x8] sm:$0xff]
    %v185 = vld [vmem:[#allocation20 + $0x10] sm:$0xff]
    %v189 = vcombine.high %v183, %v183
    %v190 = vcombine.high %v184, %v184
    %v191 = vcombine.high %v185, %v185
    %192 = vrot.lane.b32.xlu0 %v183, 19
    %v193 = vpop.permute.xlu0 %192
    %194 = vrot.lane.b32.xlu0 %v189, 19
    %v195 = vpop.permute.xlu0 %194
    %196 = vrot.lane.b32.xlu0 %v184, 19
    %v197 = vpop.permute.xlu0 %196
    %198 = vrot.lane.b32.xlu0 %v190, 19
    %v199 = vpop.permute.xlu0 %198
    %200 = vrot.lane.b32.xlu0 %v185, 19
    %v201 = vpop.permute.xlu0 %200
    %202 = vrot.lane.b32.xlu0 %v191, 19
    %v203 = vpop.permute.xlu0 %202
    %vm204 = vcmask 154624
    %v205 = vsel %vm204, %v193, %v195
    %v206 = vsel %vm204, %v195, %v197
    %v207 = vsel %vm204, %v197, %v199
    %v208 = vsel %vm204, %v199, %v201
    %v209 = vsel %vm204, %v201, %v203
    %216 = vst [vmem:[#allocation3] sm:$0xf] %v205
    %217 = vst [vmem:[#allocation3 + $0x8] sm:$0xf] %v206
    %218 = vst [vmem:[#allocation3 + $0x10] sm:$0xf] %v207
    %219 = vst [vmem:[#allocation3 + $0x18] sm:$0xf] %v208
    %220 = vst [vmem:[#allocation3 + $0x20] sm:$0xf] %v209
    %vm221 = vcmask 60416
    %222 = vst.msk [vmem:[#allocation3 + $0x28] sm:$0xf] %vm221, %v203
    %v223 = vld [vmem:[#allocation20] sm:$0xff]
    %v224 = vld [vmem:[#allocation20 + $0x8] sm:$0xff]
    %v225 = vld [vmem:[#allocation20 + $0x10] sm:$0xff]
    %v229 = vcombine.low %v223, %v223
    %v230 = vcombine.low %v224, %v224
    %v231 = vcombine.low %v225, %v225
    %232 = vrot.lane.b32.xlu0 %v229, 18
    %v233 = vpop.permute.xlu0 %232
    %234 = vrot.lane.b32.xlu0 %v223, 18
    %v235 = vpop.permute.xlu0 %234
    %236 = vrot.lane.b32.xlu0 %v230, 18
    %v237 = vpop.permute.xlu0 %236
    %238 = vrot.lane.b32.xlu0 %v224, 18
    %v239 = vpop.permute.xlu0 %238
    %240 = vrot.lane.b32.xlu0 %v231, 18
    %v241 = vpop.permute.xlu0 %240
    %242 = vrot.lane.b32.xlu0 %v225, 18
    %v243 = vpop.permute.xlu0 %242
    %vm244 = vcmask 146432
    %v245 = vsel %vm244, %v233, %v235
    %v246 = vsel %vm244, %v235, %v237
    %v247 = vsel %vm244, %v237, %v239
    %v248 = vsel %vm244, %v239, %v241
    %v249 = vsel %vm244, %v241, %v243
    %256 = vst [vmem:[#allocation3] sm:$0xf0] %v245
    %257 = vst [vmem:[#allocation3 + $0x8] sm:$0xf0] %v246
    %258 = vst [vmem:[#allocation3 + $0x10] sm:$0xf0] %v247
    %259 = vst [vmem:[#allocation3 + $0x18] sm:$0xf0] %v248
    %260 = vst [vmem:[#allocation3 + $0x20] sm:$0xf0] %v249
    %vm261 = vcmask 64516
    %262 = vst.msk [vmem:[#allocation3 + $0x28] sm:$0xf0] %vm261, %v243
    %v263 = vld [vmem:[#allocation20] sm:$0xff]
    %v264 = vld [vmem:[#allocation20 + $0x8] sm:$0xff]
    %v265 = vld [vmem:[#allocation20 + $0x10] sm:$0xff]
    %v269 = vcombine.high %v263, %v263
    %v270 = vcombine.high %v264, %v264
    %v271 = vcombine.high %v265, %v265
    %272 = vrot.lane.b32.xlu0 %v263, 17
    %v273 = vpop.permute.xlu0 %272
    %274 = vrot.lane.b32.xlu0 %v269, 17
    %v275 = vpop.permute.xlu0 %274
    %276 = vrot.lane.b32.xlu0 %v264, 17
    %v277 = vpop.permute.xlu0 %276
    %278 = vrot.lane.b32.xlu0 %v270, 17
    %v279 = vpop.permute.xlu0 %278
    %280 = vrot.lane.b32.xlu0 %v265, 17
    %v281 = vpop.permute.xlu0 %280
    %282 = vrot.lane.b32.xlu0 %v271, 17
    %v283 = vpop.permute.xlu0 %282
    %vm284 = vcmask 138240
    %v285 = vsel %vm284, %v273, %v275
    %v286 = vsel %vm284, %v275, %v277
    %v287 = vsel %vm284, %v277, %v279
    %v288 = vsel %vm284, %v279, %v281
    %v289 = vsel %vm284, %v281, %v283
    %296 = vst [vmem:[#allocation3 + $0x30] sm:$0xf] %v285
    %297 = vst [vmem:[#allocation3 + $0x38] sm:$0xf] %v286
    %298 = vst [vmem:[#allocation3 + $0x40] sm:$0xf] %v287
    %299 = vst [vmem:[#allocation3 + $0x48] sm:$0xf] %v288
    %300 = vst [vmem:[#allocation3 + $0x50] sm:$0xf] %v289
    %301 = vst.msk [vmem:[#allocation3 + $0x58] sm:$0xf] %vm221, %v283
    %v302 = vld [vmem:[#allocation20] sm:$0xff]
    %v303 = vld [vmem:[#allocation20 + $0x8] sm:$0xff]
    %v304 = vld [vmem:[#allocation20 + $0x10] sm:$0xff]
    %v305 = vld [vmem:[#allocation20 + $0x18] sm:$0xf]
    %v310 = vcombine.low %v302, %v302
    %v311 = vcombine.low %v303, %v303
    %v312 = vcombine.low %v304, %v304
    %v313 = vcombine.low %v305, %v305
    %314 = vrot.lane.b32.xlu0 %v310, 1
    %v315 = vpop.permute.xlu0 %314
    %316 = vrot.lane.b32.xlu0 %v302, 1
    %v317 = vpop.permute.xlu0 %316
    %318 = vrot.lane.b32.xlu0 %v311, 1
    %v319 = vpop.permute.xlu0 %318
    %320 = vrot.lane.b32.xlu0 %v303, 1
    %v321 = vpop.permute.xlu0 %320
    %322 = vrot.lane.b32.xlu0 %v312, 1
    %v323 = vpop.permute.xlu0 %322
    %324 = vrot.lane.b32.xlu0 %v304, 1
    %v325 = vpop.permute.xlu0 %324
    %326 = vrot.lane.b32.xlu0 %v313, 1
    %v327 = vpop.permute.xlu0 %326
    %vm328 = vcmask 7168
    %v329 = vsel %vm328, %v315, %v317
    %v330 = vsel %vm328, %v317, %v319
    %v331 = vsel %vm328, %v319, %v321
    %v332 = vsel %vm328, %v321, %v323
    %v333 = vsel %vm328, %v323, %v325
    %v334 = vsel %vm328, %v325, %v327
    %341 = vst [vmem:[#allocation3 + $0x30] sm:$0xf0] %v329
    %342 = vst [vmem:[#allocation3 + $0x38] sm:$0xf0] %v330
    %343 = vst [vmem:[#allocation3 + $0x40] sm:$0xf0] %v331
    %344 = vst [vmem:[#allocation3 + $0x48] sm:$0xf0] %v332
    %345 = vst [vmem:[#allocation3 + $0x50] sm:$0xf0] %v333
    %346 = vst.msk [vmem:[#allocation3 + $0x58] sm:$0xf0] %vm261, %v334
    %v347 = vld [vmem:[#allocation20 + $0x4] sm:$0xff]
    %v348 = vld [vmem:[#allocation20 + $0xc] sm:$0xff]
    %v349 = vld [vmem:[#allocation20 + $0x14] sm:$0xff]
    %v353 = vcombine.high %v347, %v347
    %v354 = vcombine.high %v348, %v348
    %v355 = vcombine.high %v349, %v349
    %359 = vst [vmem:[#allocation3 + $0x60] sm:$0xf] %v347
    %360 = vst [vmem:[#allocation3 + $0x68] sm:$0xf] %v353
    %361 = vst [vmem:[#allocation3 + $0x70] sm:$0xf] %v348
    %362 = vst [vmem:[#allocation3 + $0x78] sm:$0xf] %v354
    %363 = vst [vmem:[#allocation3 + $0x80] sm:$0xf] %v349
    %364 = vst.msk [vmem:[#allocation3 + $0x88] sm:$0xf] %vm221, %v355
    %v365 = vld [vmem:[#allocation20 + $0x4] sm:$0xff]
    %v366 = vld [vmem:[#allocation20 + $0xc] sm:$0xff]
    %v367 = vld [vmem:[#allocation20 + $0x14] sm:$0xff]
    %v371 = vcombine.low %v365, %v365
    %v372 = vcombine.low %v366, %v366
    %v373 = vcombine.low %v367, %v367
    %374 = vrot.lane.b32.xlu0 %v371, 127
    %v375 = vpop.permute.xlu0 %374
    %376 = vrot.lane.b32.xlu0 %v365, 127
    %v377 = vpop.permute.xlu0 %376
    %378 = vrot.lane.b32.xlu0 %v372, 127
    %v379 = vpop.permute.xlu0 %378
    %380 = vrot.lane.b32.xlu0 %v366, 127
    %v381 = vpop.permute.xlu0 %380
    %382 = vrot.lane.b32.xlu0 %v373, 127
    %v383 = vpop.permute.xlu0 %382
    %384 = vrot.lane.b32.xlu0 %v367, 127
    %v385 = vpop.permute.xlu0 %384
    %vm386 = vcmask 1039360
    %v387 = vsel %vm386, %v375, %v377
    %v388 = vsel %vm386, %v377, %v379
    %v389 = vsel %vm386, %v379, %v381
    %v390 = vsel %vm386, %v381, %v383
    %v391 = vsel %vm386, %v383, %v385
    %398 = vst [vmem:[#allocation3 + $0x60] sm:$0xf0] %v387
    %399 = vst [vmem:[#allocation3 + $0x68] sm:$0xf0] %v388
    %400 = vst [vmem:[#allocation3 + $0x70] sm:$0xf0] %v389
    %401 = vst [vmem:[#allocation3 + $0x78] sm:$0xf0] %v390
    %402 = vst [vmem:[#allocation3 + $0x80] sm:$0xf0] %v391
    %403 = vst.msk [vmem:[#allocation3 + $0x88] sm:$0xf0] %vm261, %v385
    %v404 = vld [vmem:[#allocation20 + $0x4] sm:$0xff]
    %v405 = vld [vmem:[#allocation20 + $0xc] sm:$0xff]
    %v406 = vld [vmem:[#allocation20 + $0x14] sm:$0xff]
    %v410 = vcombine.high %v404, %v404
    %v411 = vcombine.high %v405, %v405
    %v412 = vcombine.high %v406, %v406
    %413 = vrot.lane.b32.xlu0 %v404, 111
    %v414 = vpop.permute.xlu0 %413
    %415 = vrot.lane.b32.xlu0 %v410, 111
    %v416 = vpop.permute.xlu0 %415
    %417 = vrot.lane.b32.xlu0 %v405, 111
    %v418 = vpop.permute.xlu0 %417
    %419 = vrot.lane.b32.xlu0 %v411, 111
    %v420 = vpop.permute.xlu0 %419
    %421 = vrot.lane.b32.xlu0 %v406, 111
    %v422 = vpop.permute.xlu0 %421
    %423 = vrot.lane.b32.xlu0 %v412, 111
    %v424 = vpop.permute.xlu0 %423
    %vm425 = vcmask 908288
    %v426 = vsel %vm425, %v414, %v416
    %v427 = vsel %vm425, %v416, %v418
    %v428 = vsel %vm425, %v418, %v420
    %v429 = vsel %vm425, %v420, %v422
    %v430 = vsel %vm425, %v422, %v424
    %437 = vst [vmem:[#allocation3 + $0x90] sm:$0xf] %v426
    %438 = vst [vmem:[#allocation3 + $0x98] sm:$0xf] %v427
    %439 = vst [vmem:[#allocation3 + $0xa0] sm:$0xf] %v428
    %440 = vst [vmem:[#allocation3 + $0xa8] sm:$0xf] %v429
    %441 = vst [vmem:[#allocation3 + $0xb0] sm:$0xf] %v430
    %442 = vst.msk [vmem:[#allocation3 + $0xb8] sm:$0xf] %vm221, %v424
    %v443 = vld [vmem:[#allocation20 + $0x4] sm:$0xff]
    %v444 = vld [vmem:[#allocation20 + $0xc] sm:$0xff]
    %v445 = vld [vmem:[#allocation20 + $0x14] sm:$0xff]
    %v449 = vcombine.low %v443, %v443
    %v450 = vcombine.low %v444, %v444
    %v451 = vcombine.low %v445, %v445
    %452 = vrot.lane.b32.xlu0 %v449, 110
    %v453 = vpop.permute.xlu0 %452
    %454 = vrot.lane.b32.xlu0 %v443, 110
    %v455 = vpop.permute.xlu0 %454
    %456 = vrot.lane.b32.xlu0 %v450, 110
    %v457 = vpop.permute.xlu0 %456
    %458 = vrot.lane.b32.xlu0 %v444, 110
    %v459 = vpop.permute.xlu0 %458
    %460 = vrot.lane.b32.xlu0 %v451, 110
    %v461 = vpop.permute.xlu0 %460
    %462 = vrot.lane.b32.xlu0 %v445, 110
    %v463 = vpop.permute.xlu0 %462
    %vm464 = vcmask 900096
    %v465 = vsel %vm464, %v453, %v455
    %v466 = vsel %vm464, %v455, %v457
    %v467 = vsel %vm464, %v457, %v459
    %v468 = vsel %vm464, %v459, %v461
    %v469 = vsel %vm464, %v461, %v463
    %476 = vst [vmem:[#allocation3 + $0x90] sm:$0xf0] %v465
    %477 = vst [vmem:[#allocation3 + $0x98] sm:$0xf0] %v466
    %478 = vst [vmem:[#allocation3 + $0xa0] sm:$0xf0] %v467
    %479 = vst [vmem:[#allocation3 + $0xa8] sm:$0xf0] %v468
    %480 = vst [vmem:[#allocation3 + $0xb0] sm:$0xf0] %v469
    %481 = vst.msk [vmem:[#allocation3 + $0xb8] sm:$0xf0] %vm261, %v463
    %v482 = vld [vmem:[#allocation20 + $0x4] sm:$0xff]
    %v483 = vld [vmem:[#allocation20 + $0xc] sm:$0xff]
    %v484 = vld [vmem:[#allocation20 + $0x14] sm:$0xff]
    %v488 = vcombine.high %v482, %v482
    %v489 = vcombine.high %v483, %v483
    %v490 = vcombine.high %v484, %v484
    %491 = vrot.lane.b32.xlu0 %v482, 109
    %v492 = vpop.permute.xlu0 %491
    %493 = vrot.lane.b32.xlu0 %v488, 109
    %v494 = vpop.permute.xlu0 %493
    %495 = vrot.lane.b32.xlu0 %v483, 109
    %v496 = vpop.permute.xlu0 %495
    %497 = vrot.lane.b32.xlu0 %v489, 109
    %v498 = vpop.permute.xlu0 %497
    %499 = vrot.lane.b32.xlu0 %v484, 109
    %v500 = vpop.permute.xlu0 %499
    %501 = vrot.lane.b32.xlu0 %v490, 109
    %v502 = vpop.permute.xlu0 %501
    %vm503 = vcmask 891904
    %v504 = vsel %vm503, %v492, %v494
    %v505 = vsel %vm503, %v494, %v496
    %v506 = vsel %vm503, %v496, %v498
    %v507 = vsel %vm503, %v498, %v500
    %v508 = vsel %vm503, %v500, %v502
    %515 = vst [vmem:[#allocation3 + $0xc0] sm:$0xf] %v504
    %516 = vst [vmem:[#allocation3 + $0xc8] sm:$0xf] %v505
    %517 = vst [vmem:[#allocation3 + $0xd0] sm:$0xf] %v506
    %518 = vst [vmem:[#allocation3 + $0xd8] sm:$0xf] %v507
    %519 = vst [vmem:[#allocation3 + $0xe0] sm:$0xf] %v508
    %520 = vst.msk [vmem:[#allocation3 + $0xe8] sm:$0xf] %vm221, %v502
    %v521 = vld [vmem:[%s0] sm:$0xff]
    %v522 = vld [vmem:[#allocation3] sm:$0xff]
    %v523 = vld [vmem:[#allocation3 + $0x8] sm:$0xff]
    %v524 = vld [vmem:[#allocation3 + $0x10] sm:$0xff]
    %v525 = vld [vmem:[#allocation3 + $0x18] sm:$0xff]
    %v526 = vld [vmem:[#allocation3 + $0x20] sm:$0xff]
    %v527 = vld [vmem:[#allocation3 + $0x28] sm:$0xff]
    %v528 = vld [vmem:[#allocation3 + $0x30] sm:$0xff]
    %v529 = vld [vmem:[#allocation3 + $0x38] sm:$0xff]
    %v530 = vld [vmem:[#allocation3 + $0x40] sm:$0xff]
    %v531 = vld [vmem:[#allocation3 + $0x48] sm:$0xff]
    %v532 = vld [vmem:[#allocation3 + $0x50] sm:$0xff]
    %v533 = vld [vmem:[#allocation3 + $0x58] sm:$0xff]
    %v534 = vld [vmem:[#allocation3 + $0x60] sm:$0xff]
    %v535 = vld [vmem:[#allocation3 + $0x68] sm:$0xff]
    %v536 = vld [vmem:[#allocation3 + $0x70] sm:$0xff]
    %v537 = vld [vmem:[#allocation3 + $0x78] sm:$0xff]
    %v538 = vld [vmem:[#allocation3 + $0x80] sm:$0xff]
    %v539 = vld [vmem:[#allocation3 + $0x88] sm:$0xff]
    %v540 = vld [vmem:[#allocation3 + $0x90] sm:$0xff]
    %v541 = vld [vmem:[#allocation3 + $0x98] sm:$0xff]
    %v542 = vld [vmem:[#allocation3 + $0xa0] sm:$0xff]
    %v543 = vld [vmem:[#allocation3 + $0xa8] sm:$0xff]
    %v544 = vld [vmem:[#allocation3 + $0xb0] sm:$0xff]
    %v545 = vld [vmem:[#allocation3 + $0xb8] sm:$0xff]
    %v546 = vld [vmem:[#allocation3 + $0xc0] sm:$0xf]
    %v547 = vld [vmem:[#allocation3 + $0xc8] sm:$0xf]
    %v548 = vld [vmem:[#allocation3 + $0xd0] sm:$0xf]
    %v549 = vld [vmem:[#allocation3 + $0xd8] sm:$0xf]
    %v550 = vld [vmem:[#allocation3 + $0xe0] sm:$0xf]
    %v551 = vld [vmem:[#allocation3 + $0xe8] sm:$0xf]
    %v552 = vld [vmem:[%s1] sm:$0xff]
    %554 = vset.pattern.permute.xlu0 0
    %555 = vperm.xlu0 %554, %v552
    %v556 = vpop.permute.xlu0 %555
    %vm558 = vcmask 293888
    %v560 = vsel %vm558, %v521, 0
    %vm562 = vcmask 1043456
    %v564 = vsel %vm562, %v546, 0
    %v567 = vsel %vm562, %v547, 0
    %v570 = vsel %vm562, %v548, 0
    %v573 = vsel %vm562, %v549, 0
    %v576 = vsel %vm562, %v550, 0
    %v579 = vsel %vm562, %v551, 0
    %581 = vmatprep.subr.mxu0 %v523
    %582 = vmatpush1.msra.mxu0 %v522
    %583 = vmatprep.subr.mxu0 %v529
    %584 = vmatpush1.msra.mxu0 %v528
    %585 = vmatprep.subr.mxu0 %v535
    %586 = vmatpush1.msra.mxu0 %v534
    %587 = vmatprep.subr.mxu0 %v541
    %588 = vmatpush1.msra.mxu0 %v540
    %589 = vmatprep.subr.mxu0 %v567
    %590 = vmatpush1.msra.mxu0 %v564
    %591 = vmatprep.subr.mxu0 0.0
    %592 = vmatpush1.msra.mxu0 0.0
    %593 = vmatprep.subr.mxu0 0.0
    %594 = vmatpush1.msra.mxu0 0.0
    %595 = vmatprep.subr.mxu0 0.0
    %596 = vmatpush1.msra.mxu0 0.0
    %597 = vmatprep.subr.mxu0 0.0
    %598 = vmatpush1.msra.mxu0 0.0
    %599 = vmatprep.subr.mxu0 0.0
    %600 = vmatpush1.msra.mxu0 0.0
    %601 = vmatprep.subr.mxu0 0.0
    %602 = vmatpush1.msra.mxu0 0.0
    %603 = vmatprep.subr.mxu0 0.0
    %604 = vmatpush1.msra.mxu0 0.0
    %605 = vmatprep.subr.mxu0 0.0
    %606 = vmatpush1.msra.mxu0 0.0
    %607 = vmatprep.subr.mxu0 0.0
    %608 = vmatpush1.msra.mxu0 0.0
    %609 = vmatprep.subr.mxu0 0.0
    %610 = vmatpush1.msra.mxu0 0.0
    %611 = vmatprep.subr.mxu0 0.0
    %612 = vmatpush1.msra.mxu0 0.0
    %613 = vmatprep.subr.mxu0 0.0
    %614 = vmatpush1.msra.mxu0 0.0
    %615 = vmatprep.subr.mxu0 0.0
    %616 = vmatpush1.msra.mxu0 0.0
    %617 = vmatprep.subr.mxu0 0.0
    %618 = vmatpush1.msra.mxu0 0.0
    %619 = vmatprep.subr.mxu0 0.0
    %620 = vmatpush1.msra.mxu0 0.0
    %621 = vmatprep.subr.mxu0 0.0
    %622 = vmatpush1.msra.mxu0 0.0
    %623 = vmatprep.subr.mxu0 0.0
    %624 = vmatpush1.msra.mxu0 0.0
    %625 = vmatprep.subr.mxu0 0.0
    %626 = vmatpush1.msra.mxu0 0.0
    %627 = vmatprep.subr.mxu0 0.0
    %628 = vmatpush1.msra.mxu0 0.0
    %629 = vmatprep.subr.mxu0 0.0
    %630 = vmatpush1.msra.mxu0 0.0
    %631 = vmatprep.subr.mxu0 0.0
    %632 = vmatpush1.msra.mxu0 0.0
    %633 = vmatprep.subr.mxu0 0.0
    %634 = vmatpush1.msra.mxu0 0.0
    %635 = vmatprep.subr.mxu0 0.0
    %636 = vmatpush1.msra.mxu0 0.0
    %637 = vmatprep.subr.mxu0 0.0
    %638 = vmatpush1.msra.mxu0 0.0
    %639 = vmatprep.subr.mxu0 0.0
    %640 = vmatpush1.msra.mxu0 0.0
    %641 = vmatprep.subr.mxu0 0.0
    %642 = vmatpush1.msra.mxu0 0.0
    %643 = vmatprep.subr.mxu0 0.0
    %644 = vmatpush1.msra.mxu0 0.0
    %645 = vmatprep.mubr.f32.mxu0 0.0
    %646 = vmatmul.mubr.f32.gmra.mrb[0].mxu0 %v560
    %v647 = vpop.f32.mrb[0].mxu0
    %v648 = vadd.f32 %v556, %v647
    %v649 = vpop.f32.mrb[0].mxu0
    %v650 = vadd.f32 %v556, %v649
    %651 = vdwg.mxu0
    %652 = vmatprep.subr.mxu0 %v525
    %653 = vmatpush1.msra.mxu0 %v524
    %654 = vmatprep.subr.mxu0 %v531
    %655 = vmatpush1.msra.mxu0 %v530
    %656 = vmatprep.subr.mxu0 %v537
    %657 = vmatpush1.msra.mxu0 %v536
    %658 = vmatprep.subr.mxu0 %v543
    %659 = vmatpush1.msra.mxu0 %v542
    %660 = vmatprep.subr.mxu0 %v573
    %661 = vmatpush1.msra.mxu0 %v570
    %662 = vmatprep.subr.mxu0 0.0
    %663 = vmatpush1.msra.mxu0 0.0
    %664 = vmatprep.subr.mxu0 0.0
    %665 = vmatpush1.msra.mxu0 0.0
    %666 = vmatprep.subr.mxu0 0.0
    %667 = vmatpush1.msra.mxu0 0.0
    %668 = vmatprep.subr.mxu0 0.0
    %669 = vmatpush1.msra.mxu0 0.0
    %670 = vmatprep.subr.mxu0 0.0
    %671 = vmatpush1.msra.mxu0 0.0
    %672 = vmatprep.subr.mxu0 0.0
    %673 = vmatpush1.msra.mxu0 0.0
    %674 = vmatprep.subr.mxu0 0.0
    %675 = vmatpush1.msra.mxu0 0.0
    %676 = vmatprep.subr.mxu0 0.0
    %677 = vmatpush1.msra.mxu0 0.0
    %678 = vmatprep.subr.mxu0 0.0
    %679 = vmatpush1.msra.mxu0 0.0
    %680 = vmatprep.subr.mxu0 0.0
    %681 = vmatpush1.msra.mxu0 0.0
    %682 = vmatprep.subr.mxu0 0.0
    %683 = vmatpush1.msra.mxu0 0.0
    %684 = vmatprep.subr.mxu0 0.0
    %685 = vmatpush1.msra.mxu0 0.0
    %686 = vmatprep.subr.mxu0 0.0
    %687 = vmatpush1.msra.mxu0 0.0
    %688 = vmatprep.subr.mxu0 0.0
    %689 = vmatpush1.msra.mxu0 0.0
    %690 = vmatprep.subr.mxu0 0.0
    %691 = vmatpush1.msra.mxu0 0.0
    %692 = vmatprep.subr.mxu0 0.0
    %693 = vmatpush1.msra.mxu0 0.0
    %694 = vmatprep.subr.mxu0 0.0
    %695 = vmatpush1.msra.mxu0 0.0
    %696 = vmatprep.subr.mxu0 0.0
    %697 = vmatpush1.msra.mxu0 0.0
    %698 = vmatprep.subr.mxu0 0.0
    %699 = vmatpush1.msra.mxu0 0.0
    %700 = vmatprep.subr.mxu0 0.0
    %701 = vmatpush1.msra.mxu0 0.0
    %702 = vmatprep.subr.mxu0 0.0
    %703 = vmatpush1.msra.mxu0 0.0
    %704 = vmatprep.subr.mxu0 0.0
    %705 = vmatpush1.msra.mxu0 0.0
    %706 = vmatprep.subr.mxu0 0.0
    %707 = vmatpush1.msra.mxu0 0.0
    %708 = vmatprep.subr.mxu0 0.0
    %709 = vmatpush1.msra.mxu0 0.0
    %710 = vmatprep.subr.mxu0 0.0
    %711 = vmatpush1.msra.mxu0 0.0
    %712 = vmatprep.subr.mxu0 0.0
    %713 = vmatpush1.msra.mxu0 0.0
    %714 = vmatprep.subr.mxu0 0.0
    %715 = vmatpush1.msra.mxu0 0.0
    %716 = vmatprep.mubr.f32.mxu0 0.0
    %717 = vmatmul.mubr.f32.gmra.mrb[0].mxu0 %v560
    %v718 = vpop.f32.mrb[0].mxu0
    %v719 = vadd.f32 %v556, %v718
    %v720 = vpop.f32.mrb[0].mxu0
    %v721 = vadd.f32 %v556, %v720
    %722 = vdwg.mxu0
    %723 = vmatprep.subr.mxu0 %v527
    %724 = vmatpush1.msra.mxu0 %v526
    %725 = vmatprep.subr.mxu0 %v533
    %726 = vmatpush1.msra.mxu0 %v532
    %727 = vmatprep.subr.mxu0 %v539
    %728 = vmatpush1.msra.mxu0 %v538
    %729 = vmatprep.subr.mxu0 %v545
    %730 = vmatpush1.msra.mxu0 %v544
    %731 = vmatprep.subr.mxu0 %v579
    %732 = vmatpush1.msra.mxu0 %v576
    %733 = vmatprep.subr.mxu0 0.0
    %734 = vmatpush1.msra.mxu0 0.0
    %735 = vmatprep.subr.mxu0 0.0
    %736 = vmatpush1.msra.mxu0 0.0
    %737 = vmatprep.subr.mxu0 0.0
    %738 = vmatpush1.msra.mxu0 0.0
    %739 = vmatprep.subr.mxu0 0.0
    %740 = vmatpush1.msra.mxu0 0.0
    %741 = vmatprep.subr.mxu0 0.0
    %742 = vmatpush1.msra.mxu0 0.0
    %743 = vmatprep.subr.mxu0 0.0
    %744 = vmatpush1.msra.mxu0 0.0
    %745 = vmatprep.subr.mxu0 0.0
    %746 = vmatpush1.msra.mxu0 0.0
    %747 = vmatprep.subr.mxu0 0.0
    %748 = vmatpush1.msra.mxu0 0.0
    %749 = vmatprep.subr.mxu0 0.0
    %750 = vmatpush1.msra.mxu0 0.0
    %751 = vmatprep.subr.mxu0 0.0
    %752 = vmatpush1.msra.mxu0 0.0
    %753 = vmatprep.subr.mxu0 0.0
    %754 = vmatpush1.msra.mxu0 0.0
    %755 = vmatprep.subr.mxu0 0.0
    %756 = vmatpush1.msra.mxu0 0.0
    %757 = vmatprep.subr.mxu0 0.0
    %758 = vmatpush1.msra.mxu0 0.0
    %759 = vmatprep.subr.mxu0 0.0
    %760 = vmatpush1.msra.mxu0 0.0
    %761 = vmatprep.subr.mxu0 0.0
    %762 = vmatpush1.msra.mxu0 0.0
    %763 = vmatprep.subr.mxu0 0.0
    %764 = vmatpush1.msra.mxu0 0.0
    %765 = vmatprep.subr.mxu0 0.0
    %766 = vmatpush1.msra.mxu0 0.0
    %767 = vmatprep.subr.mxu0 0.0
    %768 = vmatpush1.msra.mxu0 0.0
    %769 = vmatprep.subr.mxu0 0.0
    %770 = vmatpush1.msra.mxu0 0.0
    %771 = vmatprep.subr.mxu0 0.0
    %772 = vmatpush1.msra.mxu0 0.0
    %773 = vmatprep.subr.mxu0 0.0
    %774 = vmatpush1.msra.mxu0 0.0
    %775 = vmatprep.subr.mxu0 0.0
    %776 = vmatpush1.msra.mxu0 0.0
    %777 = vmatprep.subr.mxu0 0.0
    %778 = vmatpush1.msra.mxu0 0.0
    %779 = vmatprep.subr.mxu0 0.0
    %780 = vmatpush1.msra.mxu0 0.0
    %781 = vmatprep.subr.mxu0 0.0
    %782 = vmatpush1.msra.mxu0 0.0
    %783 = vmatprep.subr.mxu0 0.0
    %784 = vmatpush1.msra.mxu0 0.0
    %785 = vmatprep.subr.mxu0 0.0
    %786 = vmatpush1.msra.mxu0 0.0
    %787 = vmatprep.mubr.f32.mxu0 0.0
    %788 = vmatmul.mubr.f32.gmra.mrb[0].mxu0 %v560
    %v789 = vpop.f32.mrb[0].mxu0
    %v790 = vadd.f32 %v556, %v789
    %v791 = vpop.f32.mrb[0].mxu0
    %v792 = vadd.f32 %v556, %v791
    %793 = vdwg.mxu0
    %v794 = vmax.f32 %v648, 0.0
    %v795 = vmax.f32 %v650, 0.0
    %v796 = vmax.f32 %v719, 0.0
    %v797 = vmax.f32 %v721, 0.0
    %v798 = vmax.f32 %v790, 0.0
    %v799 = vmax.f32 %v792, 0.0
    %v800 = vld [vmem:[%s3] sm:$0x3f]
    %v802 = vlaneseq
    %v803 = vshrl.u32 %v802, 7
    %v804 = vsub.s32 0, %v803
    %v805 = vrot.slane %v800, %v804
    %v806 = vlaneseq
    %v807 = vshrl.u32 %v806, 7
    %v808 = vsub.s32 1, %v807
    %v809 = vrot.slane %v800, %v808
    %v810 = vlaneseq
    %v811 = vshrl.u32 %v810, 7
    %v812 = vsub.s32 2, %v811
    %v813 = vrot.slane %v800, %v812
    %v814 = vlaneseq
    %v815 = vshrl.u32 %v814, 7
    %v816 = vsub.s32 3, %v815
    %v817 = vrot.slane %v800, %v816
    %v818 = vlaneseq
    %v819 = vshrl.u32 %v818, 7
    %v820 = vsub.s32 4, %v819
    %v821 = vrot.slane %v800, %v820
    %v822 = vlaneseq
    %v823 = vshrl.u32 %v822, 7
    %v824 = vsub.s32 5, %v823
    %v825 = vrot.slane %v800, %v824
    %v832 = vmul.f32 %v794, %v805
    %v833 = vmul.f32 %v795, %v809
    %v834 = vmul.f32 %v796, %v813
    %v835 = vmul.f32 %v797, %v817
    %v836 = vmul.f32 %v798, %v821
    %v837 = vmul.f32 %v799, %v825
    %838 = vst [vmem:[#allocation2] sm:$0xff] 0.0
    %vm839 = vcmask 1047616
    %840 = vst.msk [vmem:[#allocation2 + $0x30] sm:$0xff] %vm839, 0.0
    %vm841 = vcmask 64512
    %842 = vst.msk [vmem:[#allocation2 + $0x38] sm:$0xff] %vm841, 0.0
    %843 = vst [vmem:[#allocation2 + $0x8] sm:$0xff] %v832
    %844 = vst [vmem:[#allocation2 + $0x10] sm:$0xff] %v833
    %845 = vst [vmem:[#allocation2 + $0x18] sm:$0xff] %v834
    %846 = vst [vmem:[#allocation2 + $0x20] sm:$0xff] %v835
    %847 = vst [vmem:[#allocation2 + $0x28] sm:$0xff] %v836
    %848 = vst.msk [vmem:[#allocation2 + $0x30] sm:$0xff] %vm841, %v837
    %v849 = vld [vmem:[#allocation2] sm:$0xff]
    %v850 = vld [vmem:[#allocation2 + $0x8] sm:$0xff]
    %v851 = vld [vmem:[#allocation2 + $0x10] sm:$0xff]
    %v852 = vld [vmem:[#allocation2 + $0x18] sm:$0xff]
    %v853 = vld [vmem:[#allocation2 + $0x20] sm:$0xff]
    %v854 = vld [vmem:[#allocation2 + $0x28] sm:$0xff]
    %861 = vrot.lane.b32.xlu0 %v849, 19
    %v862 = vpop.permute.xlu0 %861
    %863 = vrot.lane.b32.xlu0 %v850, 19
    %v864 = vpop.permute.xlu0 %863
    %865 = vrot.lane.b32.xlu0 %v851, 19
    %v866 = vpop.permute.xlu0 %865
    %867 = vrot.lane.b32.xlu0 %v852, 19
    %v868 = vpop.permute.xlu0 %867
    %869 = vrot.lane.b32.xlu0 %v853, 19
    %v870 = vpop.permute.xlu0 %869
    %871 = vrot.lane.b32.xlu0 %v854, 19
    %v872 = vpop.permute.xlu0 %871
    %v873 = vsel %vm204, %v862, %v864
    %v874 = vsel %vm204, %v864, %v866
    %v875 = vsel %vm204, %v866, %v868
    %v876 = vsel %vm204, %v868, %v870
    %v877 = vsel %vm204, %v870, %v872
    %884 = vst [vmem:[#allocation4] sm:$0xff] %v873
    %885 = vst [vmem:[#allocation4 + $0x8] sm:$0xff] %v874
    %886 = vst [vmem:[#allocation4 + $0x10] sm:$0xff] %v875
    %887 = vst [vmem:[#allocation4 + $0x18] sm:$0xff] %v876
    %888 = vst [vmem:[#allocation4 + $0x20] sm:$0xff] %v877
    %889 = vst.msk [vmem:[#allocation4 + $0x28] sm:$0xff] %vm841, %v872
    %v890 = vld [vmem:[#allocation2] sm:$0xff]
    %v891 = vld [vmem:[#allocation2 + $0x8] sm:$0xff]
    %v892 = vld [vmem:[#allocation2 + $0x10] sm:$0xff]
    %v893 = vld [vmem:[#allocation2 + $0x18] sm:$0xff]
    %v894 = vld [vmem:[#allocation2 + $0x20] sm:$0xff]
    %v895 = vld [vmem:[#allocation2 + $0x28] sm:$0xff]
    %902 = vrot.lane.b32.xlu0 %v890, 18
    %v903 = vpop.permute.xlu0 %902
    %904 = vrot.lane.b32.xlu0 %v891, 18
    %v905 = vpop.permute.xlu0 %904
    %906 = vrot.lane.b32.xlu0 %v892, 18
    %v907 = vpop.permute.xlu0 %906
    %908 = vrot.lane.b32.xlu0 %v893, 18
    %v909 = vpop.permute.xlu0 %908
    %910 = vrot.lane.b32.xlu0 %v894, 18
    %v911 = vpop.permute.xlu0 %910
    %912 = vrot.lane.b32.xlu0 %v895, 18
    %v913 = vpop.permute.xlu0 %912
    %v914 = vsel %vm244, %v903, %v905
    %v915 = vsel %vm244, %v905, %v907
    %v916 = vsel %vm244, %v907, %v909
    %v917 = vsel %vm244, %v909, %v911
    %v918 = vsel %vm244, %v911, %v913
    %925 = vst [vmem:[#allocation4 + $0x30] sm:$0xff] %v914
    %926 = vst [vmem:[#allocation4 + $0x38] sm:$0xff] %v915
    %927 = vst [vmem:[#allocation4 + $0x40] sm:$0xff] %v916
    %928 = vst [vmem:[#allocation4 + $0x48] sm:$0xff] %v917
    %929 = vst [vmem:[#allocation4 + $0x50] sm:$0xff] %v918
    %930 = vst.msk [vmem:[#allocation4 + $0x58] sm:$0xff] %vm841, %v913
    %v931 = vld [vmem:[#allocation2] sm:$0xff]
    %v932 = vld [vmem:[#allocation2 + $0x8] sm:$0xff]
    %v933 = vld [vmem:[#allocation2 + $0x10] sm:$0xff]
    %v934 = vld [vmem:[#allocation2 + $0x18] sm:$0xff]
    %v935 = vld [vmem:[#allocation2 + $0x20] sm:$0xff]
    %v936 = vld [vmem:[#allocation2 + $0x28] sm:$0xff]
    %943 = vrot.lane.b32.xlu0 %v931, 17
    %v944 = vpop.permute.xlu0 %943
    %945 = vrot.lane.b32.xlu0 %v932, 17
    %v946 = vpop.permute.xlu0 %945
    %947 = vrot.lane.b32.xlu0 %v933, 17
    %v948 = vpop.permute.xlu0 %947
    %949 = vrot.lane.b32.xlu0 %v934, 17
    %v950 = vpop.permute.xlu0 %949
    %951 = vrot.lane.b32.xlu0 %v935, 17
    %v952 = vpop.permute.xlu0 %951
    %953 = vrot.lane.b32.xlu0 %v936, 17
    %v954 = vpop.permute.xlu0 %953
    %v955 = vsel %vm284, %v944, %v946
    %v956 = vsel %vm284, %v946, %v948
    %v957 = vsel %vm284, %v948, %v950
    %v958 = vsel %vm284, %v950, %v952
    %v959 = vsel %vm284, %v952, %v954
    %966 = vst [vmem:[#allocation4 + $0x60] sm:$0xff] %v955
    %967 = vst [vmem:[#allocation4 + $0x68] sm:$0xff] %v956
    %968 = vst [vmem:[#allocation4 + $0x70] sm:$0xff] %v957
    %969 = vst [vmem:[#allocation4 + $0x78] sm:$0xff] %v958
    %970 = vst [vmem:[#allocation4 + $0x80] sm:$0xff] %v959
    %971 = vst.msk [vmem:[#allocation4 + $0x88] sm:$0xff] %vm841, %v954
    %v972 = vld [vmem:[#allocation2] sm:$0xff]
    %v973 = vld [vmem:[#allocation2 + $0x8] sm:$0xff]
    %v974 = vld [vmem:[#allocation2 + $0x10] sm:$0xff]
    %v975 = vld [vmem:[#allocation2 + $0x18] sm:$0xff]
    %v976 = vld [vmem:[#allocation2 + $0x20] sm:$0xff]
    %v977 = vld [vmem:[#allocation2 + $0x28] sm:$0xff]
    %v978 = vld [vmem:[#allocation2 + $0x30] sm:$0xff]
    %986 = vrot.lane.b32.xlu0 %v972, 1
    %v987 = vpop.permute.xlu0 %986
    %988 = vrot.lane.b32.xlu0 %v973, 1
    %v989 = vpop.permute.xlu0 %988
    %990 = vrot.lane.b32.xlu0 %v974, 1
    %v991 = vpop.permute.xlu0 %990
    %992 = vrot.lane.b32.xlu0 %v975, 1
    %v993 = vpop.permute.xlu0 %992
    %994 = vrot.lane.b32.xlu0 %v976, 1
    %v995 = vpop.permute.xlu0 %994
    %996 = vrot.lane.b32.xlu0 %v977, 1
    %v997 = vpop.permute.xlu0 %996
    %998 = vrot.lane.b32.xlu0 %v978, 1
    %v999 = vpop.permute.xlu0 %998
    %v1000 = vsel %vm328, %v987, %v989
    %v1001 = vsel %vm328, %v989, %v991
    %v1002 = vsel %vm328, %v991, %v993
    %v1003 = vsel %vm328, %v993, %v995
    %v1004 = vsel %vm328, %v995, %v997
    %v1005 = vsel %vm328, %v997, %v999
    %1012 = vst [vmem:[#allocation4 + $0x90] sm:$0xff] %v1000
    %1013 = vst [vmem:[#allocation4 + $0x98] sm:$0xff] %v1001
    %1014 = vst [vmem:[#allocation4 + $0xa0] sm:$0xff] %v1002
    %1015 = vst [vmem:[#allocation4 + $0xa8] sm:$0xff] %v1003
    %1016 = vst [vmem:[#allocation4 + $0xb0] sm:$0xff] %v1004
    %1017 = vst.msk [vmem:[#allocation4 + $0xb8] sm:$0xff] %vm841, %v1005
    %v1018 = vld [vmem:[#allocation2 + $0x8] sm:$0xff]
    %v1019 = vld [vmem:[#allocation2 + $0x10] sm:$0xff]
    %v1020 = vld [vmem:[#allocation2 + $0x18] sm:$0xff]
    %v1021 = vld [vmem:[#allocation2 + $0x20] sm:$0xff]
    %v1022 = vld [vmem:[#allocation2 + $0x28] sm:$0xff]
    %v1023 = vld [vmem:[#allocation2 + $0x30] sm:$0xff]
    %1024 = vst [vmem:[#allocation4 + $0xc0] sm:$0xff] %v1018
    %1025 = vst [vmem:[#allocation4 + $0xc8] sm:$0xff] %v1019
    %1026 = vst [vmem:[#allocation4 + $0xd0] sm:$0xff] %v1020
    %1027 = vst [vmem:[#allocation4 + $0xd8] sm:$0xff] %v1021
    %1028 = vst [vmem:[#allocation4 + $0xe0] sm:$0xff] %v1022
    %1029 = vst.msk [vmem:[#allocation4 + $0xe8] sm:$0xff] %vm841, %v1023
    %v1030 = vld [vmem:[#allocation2 + $0x8] sm:$0xff]
    %v1031 = vld [vmem:[#allocation2 + $0x10] sm:$0xff]
    %v1032 = vld [vmem:[#allocation2 + $0x18] sm:$0xff]
    %v1033 = vld [vmem:[#allocation2 + $0x20] sm:$0xff]
    %v1034 = vld [vmem:[#allocation2 + $0x28] sm:$0xff]
    %v1035 = vld [vmem:[#allocation2 + $0x30] sm:$0xff]
    %1042 = vrot.lane.b32.xlu0 %v1030, 127
    %v1043 = vpop.permute.xlu0 %1042
    %1044 = vrot.lane.b32.xlu0 %v1031, 127
    %v1045 = vpop.permute.xlu0 %1044
    %1046 = vrot.lane.b32.xlu0 %v1032, 127
    %v1047 = vpop.permute.xlu0 %1046
    %1048 = vrot.lane.b32.xlu0 %v1033, 127
    %v1049 = vpop.permute.xlu0 %1048
    %1050 = vrot.lane.b32.xlu0 %v1034, 127
    %v1051 = vpop.permute.xlu0 %1050
    %1052 = vrot.lane.b32.xlu0 %v1035, 127
    %v1053 = vpop.permute.xlu0 %1052
    %v1054 = vsel %vm386, %v1043, %v1045
    %v1055 = vsel %vm386, %v1045, %v1047
    %v1056 = vsel %vm386, %v1047, %v1049
    %v1057 = vsel %vm386, %v1049, %v1051
    %v1058 = vsel %vm386, %v1051, %v1053
    %1065 = vst [vmem:[#allocation4 + $0xf0] sm:$0xff] %v1054
    %1066 = vst [vmem:[#allocation4 + $0xf8] sm:$0xff] %v1055
    %1067 = vst [vmem:[#allocation4 + $0x100] sm:$0xff] %v1056
    %1068 = vst [vmem:[#allocation4 + $0x108] sm:$0xff] %v1057
    %1069 = vst [vmem:[#allocation4 + $0x110] sm:$0xff] %v1058
    %1070 = vst.msk [vmem:[#allocation4 + $0x118] sm:$0xff] %vm841, %v1053
    %v1071 = vld [vmem:[#allocation2 + $0x8] sm:$0xff]
    %v1072 = vld [vmem:[#allocation2 + $0x10] sm:$0xff]
    %v1073 = vld [vmem:[#allocation2 + $0x18] sm:$0xff]
    %v1074 = vld [vmem:[#allocation2 + $0x20] sm:$0xff]
    %v1075 = vld [vmem:[#allocation2 + $0x28] sm:$0xff]
    %v1076 = vld [vmem:[#allocation2 + $0x30] sm:$0xff]
    %1083 = vrot.lane.b32.xlu0 %v1071, 111
    %v1084 = vpop.permute.xlu0 %1083
    %1085 = vrot.lane.b32.xlu0 %v1072, 111
    %v1086 = vpop.permute.xlu0 %1085
    %1087 = vrot.lane.b32.xlu0 %v1073, 111
    %v1088 = vpop.permute.xlu0 %1087
    %1089 = vrot.lane.b32.xlu0 %v1074, 111
    %v1090 = vpop.permute.xlu0 %1089
    %1091 = vrot.lane.b32.xlu0 %v1075, 111
    %v1092 = vpop.permute.xlu0 %1091
    %1093 = vrot.lane.b32.xlu0 %v1076, 111
    %v1094 = vpop.permute.xlu0 %1093
    %v1095 = vsel %vm425, %v1084, %v1086
    %v1096 = vsel %vm425, %v1086, %v1088
    %v1097 = vsel %vm425, %v1088, %v1090
    %v1098 = vsel %vm425, %v1090, %v1092
    %v1099 = vsel %vm425, %v1092, %v1094
    %1106 = vst [vmem:[#allocation4 + $0x120] sm:$0xff] %v1095
    %1107 = vst [vmem:[#allocation4 + $0x128] sm:$0xff] %v1096
    %1108 = vst [vmem:[#allocation4 + $0x130] sm:$0xff] %v1097
    %1109 = vst [vmem:[#allocation4 + $0x138] sm:$0xff] %v1098
    %1110 = vst [vmem:[#allocation4 + $0x140] sm:$0xff] %v1099
    %1111 = vst.msk [vmem:[#allocation4 + $0x148] sm:$0xff] %vm841, %v1094
    %v1112 = vld [vmem:[#allocation2 + $0x8] sm:$0xff]
    %v1113 = vld [vmem:[#allocation2 + $0x10] sm:$0xff]
    %v1114 = vld [vmem:[#allocation2 + $0x18] sm:$0xff]
    %v1115 = vld [vmem:[#allocation2 + $0x20] sm:$0xff]
    %v1116 = vld [vmem:[#allocation2 + $0x28] sm:$0xff]
    %v1117 = vld [vmem:[#allocation2 + $0x30] sm:$0xff]
    %1124 = vrot.lane.b32.xlu0 %v1112, 110
    %v1125 = vpop.permute.xlu0 %1124
    %1126 = vrot.lane.b32.xlu0 %v1113, 110
    %v1127 = vpop.permute.xlu0 %1126
    %1128 = vrot.lane.b32.xlu0 %v1114, 110
    %v1129 = vpop.permute.xlu0 %1128
    %1130 = vrot.lane.b32.xlu0 %v1115, 110
    %v1131 = vpop.permute.xlu0 %1130
    %1132 = vrot.lane.b32.xlu0 %v1116, 110
    %v1133 = vpop.permute.xlu0 %1132
    %1134 = vrot.lane.b32.xlu0 %v1117, 110
    %v1135 = vpop.permute.xlu0 %1134
    %v1136 = vsel %vm464, %v1125, %v1127
    %v1137 = vsel %vm464, %v1127, %v1129
    %v1138 = vsel %vm464, %v1129, %v1131
    %v1139 = vsel %vm464, %v1131, %v1133
    %v1140 = vsel %vm464, %v1133, %v1135
    %1147 = vst [vmem:[#allocation4 + $0x150] sm:$0xff] %v1136
    %1148 = vst [vmem:[#allocation4 + $0x158] sm:$0xff] %v1137
    %1149 = vst [vmem:[#allocation4 + $0x160] sm:$0xff] %v1138
    %1150 = vst [vmem:[#allocation4 + $0x168] sm:$0xff] %v1139
    %1151 = vst [vmem:[#allocation4 + $0x170] sm:$0xff] %v1140
    %1152 = vst.msk [vmem:[#allocation4 + $0x178] sm:$0xff] %vm841, %v1135
    %v1153 = vld [vmem:[#allocation2 + $0x8] sm:$0xff]
    %v1154 = vld [vmem:[#allocation2 + $0x10] sm:$0xff]
    %v1155 = vld [vmem:[#allocation2 + $0x18] sm:$0xff]
    %v1156 = vld [vmem:[#allocation2 + $0x20] sm:$0xff]
    %v1157 = vld [vmem:[#allocation2 + $0x28] sm:$0xff]
    %v1158 = vld [vmem:[#allocation2 + $0x30] sm:$0xff]
    %1165 = vrot.lane.b32.xlu0 %v1153, 109
    %v1166 = vpop.permute.xlu0 %1165
    %1167 = vrot.lane.b32.xlu0 %v1154, 109
    %v1168 = vpop.permute.xlu0 %1167
    %1169 = vrot.lane.b32.xlu0 %v1155, 109
    %v1170 = vpop.permute.xlu0 %1169
    %1171 = vrot.lane.b32.xlu0 %v1156, 109
    %v1172 = vpop.permute.xlu0 %1171
    %1173 = vrot.lane.b32.xlu0 %v1157, 109
    %v1174 = vpop.permute.xlu0 %1173
    %1175 = vrot.lane.b32.xlu0 %v1158, 109
    %v1176 = vpop.permute.xlu0 %1175
    %v1177 = vsel %vm503, %v1166, %v1168
    %v1178 = vsel %vm503, %v1168, %v1170
    %v1179 = vsel %vm503, %v1170, %v1172
    %v1180 = vsel %vm503, %v1172, %v1174
    %v1181 = vsel %vm503, %v1174, %v1176
    %1188 = vst [vmem:[#allocation4 + $0x180] sm:$0xff] %v1177
    %1189 = vst [vmem:[#allocation4 + $0x188] sm:$0xff] %v1178
    %1190 = vst [vmem:[#allocation4 + $0x190] sm:$0xff] %v1179
    %1191 = vst [vmem:[#allocation4 + $0x198] sm:$0xff] %v1180
    %1192 = vst [vmem:[#allocation4 + $0x1a0] sm:$0xff] %v1181
    %1193 = vst.msk [vmem:[#allocation4 + $0x1a8] sm:$0xff] %vm841, %v1176
    %v1194 = vld [vmem:[#allocation20 + $0x4] sm:$0xff]
    %v1195 = vld [vmem:[#allocation20 + $0xc] sm:$0xff]
    %v1196 = vld [vmem:[#allocation20 + $0x14] sm:$0xff]
    %v1200 = vcombine.high %v1194, %v1194
    %v1201 = vcombine.high %v1195, %v1195
    %v1202 = vcombine.high %v1196, %v1196
    %1206 = vst [vmem:[#allocation4 + $0x1b0] sm:$0xf] %v1194
    %1207 = vst [vmem:[#allocation4 + $0x1b8] sm:$0xf] %v1200
    %1208 = vst [vmem:[#allocation4 + $0x1c0] sm:$0xf] %v1195
    %1209 = vst [vmem:[#allocation4 + $0x1c8] sm:$0xf] %v1201
    %1210 = vst [vmem:[#allocation4 + $0x1d0] sm:$0xf] %v1196
    %1211 = vst.msk [vmem:[#allocation4 + $0x1d8] sm:$0xf] %vm221, %v1202
    %v1212 = vld [vmem:[#allocation21] sm:$0xff]
    %v1213 = vld [vmem:[#allocation4] sm:$0xff]
    %v1214 = vld [vmem:[#allocation4 + $0x8] sm:$0xff]
    %v1215 = vld [vmem:[#allocation4 + $0x10] sm:$0xff]
    %v1216 = vld [vmem:[#allocation4 + $0x18] sm:$0xff]
    %v1217 = vld [vmem:[#allocation4 + $0x20] sm:$0xff]
    %v1218 = vld [vmem:[#allocation4 + $0x28] sm:$0xff]
    %v1219 = vld [vmem:[#allocation4 + $0x30] sm:$0xff]
    %v1220 = vld [vmem:[#allocation4 + $0x38] sm:$0xff]
    %v1221 = vld [vmem:[#allocation4 + $0x40] sm:$0xff]
    %v1222 = vld [vmem:[#allocation4 + $0x48] sm:$0xff]
    %v1223 = vld [vmem:[#allocation4 + $0x50] sm:$0xff]
    %v1224 = vld [vmem:[#allocation4 + $0x58] sm:$0xff]
    %v1225 = vld [vmem:[#allocation4 + $0x60] sm:$0xff]
    %v1226 = vld [vmem:[#allocation4 + $0x68] sm:$0xff]
    %v1227 = vld [vmem:[#allocation4 + $0x70] sm:$0xff]
    %v1228 = vld [vmem:[#allocation4 + $0x78] sm:$0xff]
    %v1229 = vld [vmem:[#allocation4 + $0x80] sm:$0xff]
    %v1230 = vld [vmem:[#allocation4 + $0x88] sm:$0xff]
    %v1231 = vld [vmem:[#allocation4 + $0x90] sm:$0xff]
    %v1232 = vld [vmem:[#allocation4 + $0x98] sm:$0xff]
    %v1233 = vld [vmem:[#allocation4 + $0xa0] sm:$0xff]
    %v1234 = vld [vmem:[#allocation4 + $0xa8] sm:$0xff]
    %v1235 = vld [vmem:[#allocation4 + $0xb0] sm:$0xff]
    %v1236 = vld [vmem:[#allocation4 + $0xb8] sm:$0xff]
    %v1237 = vld [vmem:[#allocation4 + $0xc0] sm:$0xff]
    %v1238 = vld [vmem:[#allocation4 + $0xc8] sm:$0xff]
    %v1239 = vld [vmem:[#allocation4 + $0xd0] sm:$0xff]
    %v1240 = vld [vmem:[#allocation4 + $0xd8] sm:$0xff]
    %v1241 = vld [vmem:[#allocation4 + $0xe0] sm:$0xff]
    %v1242 = vld [vmem:[#allocation4 + $0xe8] sm:$0xff]
    %v1243 = vld [vmem:[#allocation4 + $0xf0] sm:$0xff]
    %v1244 = vld [vmem:[#allocation4 + $0xf8] sm:$0xff]
    %v1245 = vld [vmem:[#allocation4 + $0x100] sm:$0xff]
    %v1246 = vld [vmem:[#allocation4 + $0x108] sm:$0xff]
    %v1247 = vld [vmem:[#allocation4 + $0x110] sm:$0xff]
    %v1248 = vld [vmem:[#allocation4 + $0x118] sm:$0xff]
    %v1249 = vld [vmem:[#allocation4 + $0x120] sm:$0xff]
    %v1250 = vld [vmem:[#allocation4 + $0x128] sm:$0xff]
    %v1251 = vld [vmem:[#allocation4 + $0x130] sm:$0xff]
    %v1252 = vld [vmem:[#allocation4 + $0x138] sm:$0xff]
    %v1253 = vld [vmem:[#allocation4 + $0x140] sm:$0xff]
    %v1254 = vld [vmem:[#allocation4 + $0x148] sm:$0xff]
    %v1255 = vld [vmem:[#allocation4 + $0x150] sm:$0xff]
    %v1256 = vld [vmem:[#allocation4 + $0x158] sm:$0xff]
    %v1257 = vld [vmem:[#allocation4 + $0x160] sm:$0xff]
    %v1258 = vld [vmem:[#allocation4 + $0x168] sm:$0xff]
    %v1259 = vld [vmem:[#allocation4 + $0x170] sm:$0xff]
    %v1260 = vld [vmem:[#allocation4 + $0x178] sm:$0xff]
    %v1261 = vld [vmem:[#allocation4 + $0x180] sm:$0xff]
    %v1262 = vld [vmem:[#allocation4 + $0x188] sm:$0xff]
    %v1263 = vld [vmem:[#allocation4 + $0x190] sm:$0xff]
    %v1264 = vld [vmem:[#allocation4 + $0x198] sm:$0xff]
    %v1265 = vld [vmem:[#allocation4 + $0x1a0] sm:$0xff]
    %v1266 = vld [vmem:[#allocation4 + $0x1a8] sm:$0xff]
    %v1267 = vld [vmem:[#allocation4 + $0x1b0] sm:$0xf]
    %v1268 = vld [vmem:[#allocation4 + $0x1b8] sm:$0xf]
    %v1269 = vld [vmem:[#allocation4 + $0x1c0] sm:$0xf]
    %v1270 = vld [vmem:[#allocation4 + $0x1c8] sm:$0xf]
    %v1271 = vld [vmem:[#allocation4 + $0x1d0] sm:$0xf]
    %v1272 = vld [vmem:[#allocation4 + $0x1d8] sm:$0xf]
    %v1273 = vld [vmem:[%s2] sm:$0xff]
    %1275 = vset.pattern.permute.xlu0 0
    %1276 = vperm.xlu0 %1275, %v1273
    %v1277 = vpop.permute.xlu0 %1276
    %vm1279 = vcmask 621568
    %v1281 = vsel %vm1279, %v1212, 0
    %v1284 = vsel %vm562, %v1267, 0
    %v1287 = vsel %vm562, %v1268, 0
    %v1290 = vsel %vm562, %v1269, 0
    %v1293 = vsel %vm562, %v1270, 0
    %v1296 = vsel %vm562, %v1271, 0
    %v1299 = vsel %vm562, %v1272, 0
    %1301 = vmatprep.subr.mxu0 %v1214
    %1302 = vmatpush1.msra.mxu0 %v1213
    %1303 = vmatprep.subr.mxu0 %v1220
    %1304 = vmatpush1.msra.mxu0 %v1219
    %1305 = vmatprep.subr.mxu0 %v1226
    %1306 = vmatpush1.msra.mxu0 %v1225
    %1307 = vmatprep.subr.mxu0 %v1232
    %1308 = vmatpush1.msra.mxu0 %v1231
    %1309 = vmatprep.subr.mxu0 %v1238
    %1310 = vmatpush1.msra.mxu0 %v1237
    %1311 = vmatprep.subr.mxu0 %v1244
    %1312 = vmatpush1.msra.mxu0 %v1243
    %1313 = vmatprep.subr.mxu0 %v1250
    %1314 = vmatpush1.msra.mxu0 %v1249
    %1315 = vmatprep.subr.mxu0 %v1256
    %1316 = vmatpush1.msra.mxu0 %v1255
    %1317 = vmatprep.subr.mxu0 %v1262
    %1318 = vmatpush1.msra.mxu0 %v1261
    %1319 = vmatprep.subr.mxu0 %v1287
    %1320 = vmatpush1.msra.mxu0 %v1284
    %1321 = vmatprep.subr.mxu0 0.0
    %1322 = vmatpush1.msra.mxu0 0.0
    %1323 = vmatprep.subr.mxu0 0.0
    %1324 = vmatpush1.msra.mxu0 0.0
    %1325 = vmatprep.subr.mxu0 0.0
    %1326 = vmatpush1.msra.mxu0 0.0
    %1327 = vmatprep.subr.mxu0 0.0
    %1328 = vmatpush1.msra.mxu0 0.0
    %1329 = vmatprep.subr.mxu0 0.0
    %1330 = vmatpush1.msra.mxu0 0.0
    %1331 = vmatprep.subr.mxu0 0.0
    %1332 = vmatpush1.msra.mxu0 0.0
    %1333 = vmatprep.subr.mxu0 0.0
    %1334 = vmatpush1.msra.mxu0 0.0
    %1335 = vmatprep.subr.mxu0 0.0
    %1336 = vmatpush1.msra.mxu0 0.0
    %1337 = vmatprep.subr.mxu0 0.0
    %1338 = vmatpush1.msra.mxu0 0.0
    %1339 = vmatprep.subr.mxu0 0.0
    %1340 = vmatpush1.msra.mxu0 0.0
    %1341 = vmatprep.subr.mxu0 0.0
    %1342 = vmatpush1.msra.mxu0 0.0
    %1343 = vmatprep.subr.mxu0 0.0
    %1344 = vmatpush1.msra.mxu0 0.0
    %1345 = vmatprep.subr.mxu0 0.0
    %1346 = vmatpush1.msra.mxu0 0.0
    %1347 = vmatprep.subr.mxu0 0.0
    %1348 = vmatpush1.msra.mxu0 0.0
    %1349 = vmatprep.subr.mxu0 0.0
    %1350 = vmatpush1.msra.mxu0 0.0
    %1351 = vmatprep.subr.mxu0 0.0
    %1352 = vmatpush1.msra.mxu0 0.0
    %1353 = vmatprep.subr.mxu0 0.0
    %1354 = vmatpush1.msra.mxu0 0.0
    %1355 = vmatprep.subr.mxu0 0.0
    %1356 = vmatpush1.msra.mxu0 0.0
    %1357 = vmatprep.subr.mxu0 0.0
    %1358 = vmatpush1.msra.mxu0 0.0
    %1359 = vmatprep.subr.mxu0 0.0
    %1360 = vmatpush1.msra.mxu0 0.0
    %1361 = vmatprep.subr.mxu0 0.0
    %1362 = vmatpush1.msra.mxu0 0.0
    %1363 = vmatprep.subr.mxu0 0.0
    %1364 = vmatpush1.msra.mxu0 0.0
    %1365 = vmatprep.mubr.f32.mxu0 0.0
    %1366 = vmatmul.mubr.f32.gmra.mrb[0].mxu0 %v1281
    %v1367 = vpop.f32.mrb[0].mxu0
    %v1368 = vadd.f32 %v1277, %v1367
    %v1369 = vpop.f32.mrb[0].mxu0
    %v1370 = vadd.f32 %v1277, %v1369
    %1371 = vdwg.mxu0
    %1372 = vmatprep.subr.mxu0 %v1216
    %1373 = vmatpush1.msra.mxu0 %v1215
    %1374 = vmatprep.subr.mxu0 %v1222
    %1375 = vmatpush1.msra.mxu0 %v1221
    %1376 = vmatprep.subr.mxu0 %v1228
    %1377 = vmatpush1.msra.mxu0 %v1227
    %1378 = vmatprep.subr.mxu0 %v1234
    %1379 = vmatpush1.msra.mxu0 %v1233
    %1380 = vmatprep.subr.mxu0 %v1240
    %1381 = vmatpush1.msra.mxu0 %v1239
    %1382 = vmatprep.subr.mxu0 %v1246
    %1383 = vmatpush1.msra.mxu0 %v1245
    %1384 = vmatprep.subr.mxu0 %v1252
    %1385 = vmatpush1.msra.mxu0 %v1251
    %1386 = vmatprep.subr.mxu0 %v1258
    %1387 = vmatpush1.msra.mxu0 %v1257
    %1388 = vmatprep.subr.mxu0 %v1264
    %1389 = vmatpush1.msra.mxu0 %v1263
    %1390 = vmatprep.subr.mxu0 %v1293
    %1391 = vmatpush1.msra.mxu0 %v1290
    %1392 = vmatprep.subr.mxu0 0.0
    %1393 = vmatpush1.msra.mxu0 0.0
    %1394 = vmatprep.subr.mxu0 0.0
    %1395 = vmatpush1.msra.mxu0 0.0
    %1396 = vmatprep.subr.mxu0 0.0
    %1397 = vmatpush1.msra.mxu0 0.0
    %1398 = vmatprep.subr.mxu0 0.0
    %1399 = vmatpush1.msra.mxu0 0.0
    %1400 = vmatprep.subr.mxu0 0.0
    %1401 = vmatpush1.msra.mxu0 0.0
    %1402 = vmatprep.subr.mxu0 0.0
    %1403 = vmatpush1.msra.mxu0 0.0
    %1404 = vmatprep.subr.mxu0 0.0
    %1405 = vmatpush1.msra.mxu0 0.0
    %1406 = vmatprep.subr.mxu0 0.0
    %1407 = vmatpush1.msra.mxu0 0.0
    %1408 = vmatprep.subr.mxu0 0.0
    %1409 = vmatpush1.msra.mxu0 0.0
    %1410 = vmatprep.subr.mxu0 0.0
    %1411 = vmatpush1.msra.mxu0 0.0
    %1412 = vmatprep.subr.mxu0 0.0
    %1413 = vmatpush1.msra.mxu0 0.0
    %1414 = vmatprep.subr.mxu0 0.0
    %1415 = vmatpush1.msra.mxu0 0.0
    %1416 = vmatprep.subr.mxu0 0.0
    %1417 = vmatpush1.msra.mxu0 0.0
    %1418 = vmatprep.subr.mxu0 0.0
    %1419 = vmatpush1.msra.mxu0 0.0
    %1420 = vmatprep.subr.mxu0 0.0
    %1421 = vmatpush1.msra.mxu0 0.0
    %1422 = vmatprep.subr.mxu0 0.0
    %1423 = vmatpush1.msra.mxu0 0.0
    %1424 = vmatprep.subr.mxu0 0.0
    %1425 = vmatpush1.msra.mxu0 0.0
    %1426 = vmatprep.subr.mxu0 0.0
    %1427 = vmatpush1.msra.mxu0 0.0
    %1428 = vmatprep.subr.mxu0 0.0
    %1429 = vmatpush1.msra.mxu0 0.0
    %1430 = vmatprep.subr.mxu0 0.0
    %1431 = vmatpush1.msra.mxu0 0.0
    %1432 = vmatprep.subr.mxu0 0.0
    %1433 = vmatpush1.msra.mxu0 0.0
    %1434 = vmatprep.subr.mxu0 0.0
    %1435 = vmatpush1.msra.mxu0 0.0
    %1436 = vmatprep.mubr.f32.mxu0 0.0
    %1437 = vmatmul.mubr.f32.gmra.mrb[0].mxu0 %v1281
    %v1438 = vpop.f32.mrb[0].mxu0
    %v1439 = vadd.f32 %v1277, %v1438
    %v1440 = vpop.f32.mrb[0].mxu0
    %v1441 = vadd.f32 %v1277, %v1440
    %1442 = vdwg.mxu0
    %1443 = vmatprep.subr.mxu0 %v1218
    %1444 = vmatpush1.msra.mxu0 %v1217
    %1445 = vmatprep.subr.mxu0 %v1224
    %1446 = vmatpush1.msra.mxu0 %v1223
    %1447 = vmatprep.subr.mxu0 %v1230
    %1448 = vmatpush1.msra.mxu0 %v1229
    %1449 = vmatprep.subr.mxu0 %v1236
    %1450 = vmatpush1.msra.mxu0 %v1235
    %1451 = vmatprep.subr.mxu0 %v1242
    %1452 = vmatpush1.msra.mxu0 %v1241
    %1453 = vmatprep.subr.mxu0 %v1248
    %1454 = vmatpush1.msra.mxu0 %v1247
    %1455 = vmatprep.subr.mxu0 %v1254
    %1456 = vmatpush1.msra.mxu0 %v1253
    %1457 = vmatprep.subr.mxu0 %v1260
    %1458 = vmatpush1.msra.mxu0 %v1259
    %1459 = vmatprep.subr.mxu0 %v1266
    %1460 = vmatpush1.msra.mxu0 %v1265
    %1461 = vmatprep.subr.mxu0 %v1299
    %1462 = vmatpush1.msra.mxu0 %v1296
    %1463 = vmatprep.subr.mxu0 0.0
    %1464 = vmatpush1.msra.mxu0 0.0
    %1465 = vmatprep.subr.mxu0 0.0
    %1466 = vmatpush1.msra.mxu0 0.0
    %1467 = vmatprep.subr.mxu0 0.0
    %1468 = vmatpush1.msra.mxu0 0.0
    %1469 = vmatprep.subr.mxu0 0.0
    %1470 = vmatpush1.msra.mxu0 0.0
    %1471 = vmatprep.subr.mxu0 0.0
    %1472 = vmatpush1.msra.mxu0 0.0
    %1473 = vmatprep.subr.mxu0 0.0
    %1474 = vmatpush1.msra.mxu0 0.0
    %1475 = vmatprep.subr.mxu0 0.0
    %1476 = vmatpush1.msra.mxu0 0.0
    %1477 = vmatprep.subr.mxu0 0.0
    %1478 = vmatpush1.msra.mxu0 0.0
    %1479 = vmatprep.subr.mxu0 0.0
    %1480 = vmatpush1.msra.mxu0 0.0
    %1481 = vmatprep.subr.mxu0 0.0
    %1482 = vmatpush1.msra.mxu0 0.0
    %1483 = vmatprep.subr.mxu0 0.0
    %1484 = vmatpush1.msra.mxu0 0.0
    %1485 = vmatprep.subr.mxu0 0.0
    %1486 = vmatpush1.msra.mxu0 0.0
    %1487 = vmatprep.subr.mxu0 0.0
    %1488 = vmatpush1.msra.mxu0 0.0
    %1489 = vmatprep.subr.mxu0 0.0
    %1490 = vmatpush1.msra.mxu0 0.0
    %1491 = vmatprep.subr.mxu0 0.0
    %1492 = vmatpush1.msra.mxu0 0.0
    %1493 = vmatprep.subr.mxu0 0.0
    %1494 = vmatpush1.msra.mxu0 0.0
    %1495 = vmatprep.subr.mxu0 0.0
    %1496 = vmatpush1.msra.mxu0 0.0
    %1497 = vmatprep.subr.mxu0 0.0
    %1498 = vmatpush1.msra.mxu0 0.0
    %1499 = vmatprep.subr.mxu0 0.0
    %1500 = vmatpush1.msra.mxu0 0.0
    %1501 = vmatprep.subr.mxu0 0.0
    %1502 = vmatpush1.msra.mxu0 0.0
    %1503 = vmatprep.subr.mxu0 0.0
    %1504 = vmatpush1.msra.mxu0 0.0
    %1505 = vmatprep.subr.mxu0 0.0
    %1506 = vmatpush1.msra.mxu0 0.0
    %1507 = vmatprep.mubr.f32.mxu0 0.0
    %1508 = vmatmul.mubr.f32.gmra.mrb[0].mxu0 %v1281
    %v1509 = vpop.f32.mrb[0].mxu0
    %v1510 = vadd.f32 %v1277, %v1509
    %v1511 = vpop.f32.mrb[0].mxu0
    %v1512 = vadd.f32 %v1277, %v1511
    %1513 = vdwg.mxu0
    %1514 = vst [vmem:[%s9] sm:$0xff] %v1368
    %1515 = vst [vmem:[%s9 + $0x8] sm:$0xff] %v1370
    %1516 = vst [vmem:[%s9 + $0x10] sm:$0xff] %v1439
    %1517 = vst [vmem:[%s9 + $0x18] sm:$0xff] %v1441
    %1518 = vst [vmem:[%s9 + $0x20] sm:$0xff] %v1510
    %1519 = vst.msk [vmem:[%s9 + $0x28] sm:$0xff] %vm841, %v1512
    // Predicated region
    $region30: #{residual_block_forward.2} parent=1 // pred_check
      _
    $region31: #{residual_block_forward.2} parent=1 // pred_check_branch
      %1521 = sbr.rel (0) target = $region33
    $region32: #{residual_block_forward.2} parent=1 // pred_region
      _
    $region33: #{residual_block_forward.2} parent=1 // pred_fallthru
      _
    // Predicated region
    $region34: #{residual_block_forward.2} parent=1 // pred_check
      _
    $region35: #{residual_block_forward.2} parent=1 // pred_check_branch
      %1523 = sbr.rel (0) target = $region37
    $region36: #{residual_block_forward.2} parent=1 // pred_region
      _
    $region37: #{residual_block_forward.2} parent=1 // pred_fallthru
      _

</llo_original>
